<compile_context>
chip_gen: v7x
topology: tpu7x:2x2x1
jax: 0.10.0
libtpu: 0.0.40
codegen_flags: <defaults>
</compile_context>

<pallas_src>
import functools
import math

import jax
import jax.numpy as jnp
from jax.experimental import pallas as pl
from jax.experimental.pallas import tpu as pltpu


# ----------------------------------------------------------------------------
# Fused kernel: projections + multi-head flash attention + output projection.
# ----------------------------------------------------------------------------
def _cross_attention_kernel(q_ref, x_ref, wq_ref, wkv_ref, wproj_ref,
                            bproj_ref, o_ref,
                            qh_sc, m_sc, l_sc, acc_sc,
                            *, num_heads, compute_dtype):
    """Grid = (B, n/tq, N/tkv); one (batch, q-tile) owns the scratch state and
    the innermost axis streams KV tiles (online softmax).

    q_ref     : (1, tq, C)   compute_dtype
    x_ref     : (1, tkv, C)  compute_dtype
    wq_ref    : (C, C)       compute_dtype   (pre-scaled by head_dim**-0.5)
    wkv_ref   : (C, 2C)      compute_dtype   (first C cols -> K, last C -> V)
    wproj_ref : (C, C)       compute_dtype
    bproj_ref : (1, C)       float32
    o_ref     : (1, tq, C)   float32         (same block for every KV step)
    qh_sc     : (H, tq, d)   compute_dtype   scratch
    m_sc,l_sc : (H, tq, 1)   float32         scratch
    acc_sc    : (H, tq, d)   float32         scratch
    """
    H = num_heads
    tq, C = q_ref.shape[1], q_ref.shape[2]
    d = C // H
    cd = compute_dtype
    kv_step = pl.program_id(2)

    @pl.when(kv_step == 0)
    def _init():
        # Q projection once per (batch, q-tile).  `scale` folded into wq.
        q_proj = jnp.dot(q_ref[0], wq_ref[...],
                         preferred_element_type=jnp.float32)          # (tq, C)
        q_c = q_proj.astype(cd)                                       # one cast
        # Heads are contiguous d-wide column groups -> static slices + stack.
        qh_sc[...] = jnp.stack(
            [q_c[:, h * d:(h + 1) * d] for h in range(H)], axis=0)    # (H,tq,d)
        m_sc[...] = jnp.full_like(m_sc, -jnp.inf)
        l_sc[...] = jnp.zeros_like(l_sc)
        acc_sc[...] = jnp.zeros_like(acc_sc)

    # K/V projection for this KV tile: one matmul, one f32->bf16 cast.
    kv_proj = jnp.dot(x_ref[0], wkv_ref[...],
                      preferred_element_type=jnp.float32)             # (tkv,2C)
    kv_c = kv_proj.astype(cd)
    k = jnp.stack([kv_c[:, h * d:(h + 1) * d] for h in range(H)], axis=0)
    v = jnp.stack([kv_c[:, C + h * d:C + (h + 1) * d] for h in range(H)], axis=0)

    # Scores: heads batched, contracting the LAST dims (no K transpose).
    s = jnp.einsum('hqd,hkd->hqk', qh_sc[...], k,
                   preferred_element_type=jnp.float32)                # (H,tq,tkv)

    # Online softmax update (f32 stats).
    m_prev = m_sc[...]
    m_new = jnp.maximum(m_prev, jnp.max(s, axis=-1, keepdims=True))
    alpha = jnp.exp(m_prev - m_new)
    p = jnp.exp(s - m_new)
    l_sc[...] = alpha * l_sc[...] + jnp.sum(p, axis=-1, keepdims=True)
    # Normalization deferred: accumulate unnormalized P @ V.
    acc_sc[...] = alpha * acc_sc[...] + jnp.einsum(
        'hqk,hkd->hqd', p.astype(cd), v, preferred_element_type=jnp.float32)
    m_sc[...] = m_new

    @pl.when(kv_step == pl.num_programs(2) - 1)
    def _finalize():
        # Deferred normalization on the small (H, tq, d) accumulator; exact
        # reciprocal (not approx) since it runs once per q-tile.
        o_heads = acc_sc[...] * pl.reciprocal(l_sc[...], approx=False)
        # Head merge = lane-axis concat of the per-head (tq, d) slabs.
        merged = jnp.concatenate([o_heads[h] for h in range(H)], axis=-1)
        # Single full-width (K = C) output projection + bias.
        out = jnp.dot(merged.astype(cd), wproj_ref[...],
                      preferred_element_type=jnp.float32) + bproj_ref[...]
        # NOTE: at production shapes C is a multiple of 128 -> lane-dense store.
        o_ref[0] = out.astype(o_ref.dtype)


# ----------------------------------------------------------------------------
# Wrapper
# ----------------------------------------------------------------------------
def _largest_tile(total, cap):
    """Largest multiple of 8 that divides `total` and is <= cap, else `total`."""
    if total <= cap:
        return total
    for t in range(cap, 7, -8):
        if total % t == 0:
            return t
    return total


def cross_attention_forward(q, x, params, num_heads,
                            compute_dtype=jnp.bfloat16,
                            tq_max=256, tkv_max=512):
    """q: (B, n, C), x: (B, N, C)  ->  (B, n, C) float32."""
    B, n, C = q.shape
    _, N, _ = x.shape
    assert C % num_heads == 0
    head_dim = C // num_heads
    scale = head_dim ** (-0.5)

    tq = _largest_tile(n, tq_max)
    tkv = _largest_tile(N, tkv_max)
    assert n % tq == 0 and N % tkv == 0

    # Cast once host-side (halves HBM->VMEM DMA); fold the softmax scale into
    # wq so no per-tile (tq, tkv) multiply is needed in-kernel.
    q_c = q.astype(compute_dtype)
    x_c = x.astype(compute_dtype)
    wq = (params["wq"] * scale).astype(compute_dtype)      # (C, C)
    wkv = params["wkv"].astype(compute_dtype)              # (C, 2C)
    wproj = params["wproj"].astype(compute_dtype)          # (C, C)
    bproj = params["bproj"].reshape(1, C).astype(jnp.float32)

    kernel = functools.partial(_cross_attention_kernel,
                               num_heads=num_heads, compute_dtype=compute_dtype)

    # Per-core VMEM footprint estimate (counts default double-buffering of
    # every input and the in-kernel temporaries), plus a 1.5x margin.
    itm = jnp.dtype(compute_dtype).itemsize
    H, d = num_heads, head_dim
    est = (
        2 * tq * C * itm                                   # q block x2 bufs
        + 2 * tkv * C * itm                                # x block x2 bufs
        + 2 * (C * C + C * 2 * C + C * C) * itm            # weights x2 bufs
        + 2 * C * 4                                        # bias x2 bufs
        + 2 * tq * C * 4                                   # out block x2 bufs
        + H * tq * d * itm + 2 * H * tq * 4 + H * tq * d * 4   # scratch
        + tkv * 2 * C * 4 + 2 * H * tkv * d * itm          # kv_proj f32 + k/v
        + 2 * H * tq * tkv * 4                             # s, p (f32)
        + 2 * tq * C * 4                                   # q_proj / merged
    )
    try:
        cap = int(pltpu.get_tpu_info().vmem_capacity_bytes)
    except Exception:
        cap = 128 << 20
    vmem_limit = int(min(max(int(1.5 * est), 16 << 20), cap - (12 << 20)))

    out = pl.pallas_call(
        kernel,
        out_shape=jax.ShapeDtypeStruct((B, n, C), jnp.float32),
        grid_spec=pltpu.PrefetchScalarGridSpec(
            num_scalar_prefetch=0,
            grid=(B, n // tq, N // tkv),
            in_specs=[
                pl.BlockSpec((1, tq, C), lambda b, i, j: (b, i, 0)),   # q
                pl.BlockSpec((1, tkv, C), lambda b, i, j: (b, j, 0)),  # x
                pl.BlockSpec((C, C), lambda b, i, j: (0, 0)),          # wq
                pl.BlockSpec((C, 2 * C), lambda b, i, j: (0, 0)),      # wkv
                pl.BlockSpec((C, C), lambda b, i, j: (0, 0)),          # wproj
                pl.BlockSpec((1, C), lambda b, i, j: (0, 0)),          # bproj
            ],
            out_specs=pl.BlockSpec((1, tq, C), lambda b, i, j: (b, i, 0)),
            scratch_shapes=[
                pltpu.VMEM((H, tq, d), compute_dtype),    # qh
                pltpu.VMEM((H, tq, 1), jnp.float32),      # m
                pltpu.VMEM((H, tq, 1), jnp.float32),      # l
                pltpu.VMEM((H, tq, d), jnp.float32),      # acc
            ],
        ),
        compiler_params=pltpu.CompilerParams(
            dimension_semantics=("parallel", "parallel", "arbitrary"),
            vmem_limit_bytes=vmem_limit),
    )(q_c, x_c, wq, wkv, wproj, bproj)
    return out


# ----------------------------------------------------------------------------
# Params + reference
# ----------------------------------------------------------------------------
def init_params(key, dim):
    """Deterministic init mirroring the module's __init__ shapes.
    Weights stored pre-transposed as (in_features, out_features), f32."""
    k1, k2, k3, k4 = jax.random.split(key, 4)
    s = 1.0 / math.sqrt(dim)
    return {
        "wq":    jax.random.normal(k1, (dim, dim), jnp.float32) * s,
        "wkv":   jax.random.normal(k2, (dim, 2 * dim), jnp.float32) * s,
        "wproj": jax.random.normal(k3, (dim, dim), jnp.float32) * s,
        "bproj": jax.random.normal(k4, (dim,), jnp.float32) * s,
    }


def reference_forward(q, x, params, num_heads, compute_dtype=jnp.float32):
    """Pure-JAX reference.  With compute_dtype=bfloat16 it mirrors the kernel's
    mixed precision (bf16 matmul operands, f32 accumulation, scale in wq)."""
    B, n, C = q.shape
    _, N, _ = x.shape
    d = C // num_heads
    scale = d ** (-0.5)
    cd = compute_dtype
    f32 = jnp.float32

    wq = (params["wq"] * scale).astype(cd)
    qp = jnp.dot(q.reshape(B * n, C).astype(cd), wq, preferred_element_type=f32)
    kvp = jnp.dot(x.reshape(B * N, C).astype(cd), params["wkv"].astype(cd),
                  preferred_element_type=f32)
    qh = qp.reshape(B, n, num_heads, d).transpose(0, 2, 1, 3)
    kv = kvp.reshape(B, N, 2, num_heads, d).transpose(2, 0, 3, 1, 4)
    kh, vh = kv[0], kv[1]
    s = jnp.einsum("bhqd,bhkd->bhqk", qh.astype(cd), kh.astype(cd),
                   preferred_element_type=f32)
    a = jax.nn.softmax(s, axis=-1)
    o = jnp.einsum("bhqk,bhkd->bhqd", a.astype(cd), vh.astype(cd),
                   preferred_element_type=f32)
    o = o.transpose(0, 2, 1, 3).reshape(B * n, C)
    out = jnp.dot(o.astype(cd), params["wproj"].astype(cd),
                  preferred_element_type=f32) + params["bproj"]
    return out.reshape(B, n, C)


if __name__ == "__main__":
    B, n_q, N_kv, C = 2, 16, 16, 32
    num_heads = 4

    key = jax.random.PRNGKey(0)
    kq, kx, kp = jax.random.split(key, 3)
    q_in = jax.random.normal(kq, (B, n_q, C), jnp.float32)
    x_in = jax.random.normal(kx, (B, N_kv, C), jnp.float32)
    params = init_params(kp, C)

    # Small tile caps so the toy shapes actually exercise the q-tile axis and
    # the multi-step online-softmax KV axis (2 q tiles x 2 kv tiles here).
    out = cross_attention_forward(q_in, x_in, params, num_heads,
                                  tq_max=8, tkv_max=8)
    out = jax.block_until_ready(out)

    ref = reference_forward(q_in, x_in, params, num_heads,
                            compute_dtype=jnp.bfloat16)
    assert out.shape == (B, n_q, C)
    err = float(jnp.max(jnp.abs(out - ref)))
    assert jnp.allclose(out, ref, atol=2e-2, rtol=2e-2), (
        f"mismatch vs reference, max abs err = {err}")

    print("KERNEL_OK")
</pallas_src>

<mosaic_0001>
module attributes {stable_mosaic.version = 11 : i64} {
  func.func @_cross_attention_kernel(%arg0: i32, %arg1: i32, %arg2: i32, %arg3: memref<1x8x32xbf16, #tpu.memory_space<vmem>>, %arg4: memref<1x8x32xbf16, #tpu.memory_space<vmem>>, %arg5: memref<32x32xbf16, #tpu.memory_space<vmem>>, %arg6: memref<32x64xbf16, #tpu.memory_space<vmem>>, %arg7: memref<32x32xbf16, #tpu.memory_space<vmem>>, %arg8: memref<1x32xf32, #tpu.memory_space<vmem>>, %arg9: memref<1x8x32xf32, #tpu.memory_space<vmem>>, %arg10: memref<4x8x8xbf16, #tpu.memory_space<vmem>>, %arg11: memref<4x8x1xf32, #tpu.memory_space<vmem>>, %arg12: memref<4x8x1xf32, #tpu.memory_space<vmem>>, %arg13: memref<4x8x8xf32, #tpu.memory_space<vmem>>) attributes {dimension_semantics = [#tpu.dimension_semantics<parallel>, #tpu.dimension_semantics<parallel>, #tpu.dimension_semantics<arbitrary>], iteration_bounds = array<i64: 2, 2, 2>, scalar_prefetch = 0 : i64, scratch_operands = 4 : i64, tpu.core_type = #tpu.core_type<tc>, window_params = [{transform_indices = @transform_0, window_bounds = array<i64: 1, 8, 32>}, {transform_indices = @transform_1, window_bounds = array<i64: 1, 8, 32>}, {pipeline_mode = #tpu.pipeline_mode<synchronous>, transform_indices = @transform_2, window_bounds = array<i64: 32, 32>}, {pipeline_mode = #tpu.pipeline_mode<synchronous>, transform_indices = @transform_3, window_bounds = array<i64: 32, 64>}, {pipeline_mode = #tpu.pipeline_mode<synchronous>, transform_indices = @transform_4, window_bounds = array<i64: 32, 32>}, {pipeline_mode = #tpu.pipeline_mode<synchronous>, transform_indices = @transform_5, window_bounds = array<i64: 1, 32>}, {transform_indices = @transform_6, window_bounds = array<i64: 1, 8, 32>}]} {
    %c0_i32 = arith.constant 0 : i32
    %0 = arith.cmpi eq, %arg2, %c0_i32 : i32
    %1 = arith.extui %0 : i1 to i32
    %c0_i32_0 = arith.constant 0 : i32
    %2 = arith.cmpi ne, %1, %c0_i32_0 : i32
    scf.if %2 {
      %c0_31 = arith.constant 0 : index
      %c0_32 = arith.constant 0 : index
      %c0_33 = arith.constant 0 : index
      %54 = vector.load %arg3[%c0_31, %c0_32, %c0_33] : memref<1x8x32xbf16, #tpu.memory_space<vmem>>, vector<1x8x32xbf16>
      %55 = vector.shape_cast %54 : vector<1x8x32xbf16> to vector<8x32xbf16>
      %c0_34 = arith.constant 0 : index
      %c0_35 = arith.constant 0 : index
      %56 = vector.load %arg5[%c0_34, %c0_35] : memref<32x32xbf16, #tpu.memory_space<vmem>>, vector<32x32xbf16>
      %cst_36 = arith.constant dense<0.000000e+00> : vector<8x32xf32>
      %57 = tpu.matmul %55, %56, %cst_36 {dimension_numbers = #tpu.dot_dimension_numbers<[1], [0], [0], [1], [0, 0, 1, 1], [], []>} : vector<8x32xbf16>, vector<32x32xbf16>, vector<8x32xf32> -> vector<8x32xf32>
      %58 = arith.truncf %57 : vector<8x32xf32> to vector<8x32xbf16>
      %59 = vector.extract_strided_slice %58 {offsets = [0, 0], sizes = [8, 8], strides = [1, 1]} : vector<8x32xbf16> to vector<8x8xbf16>
      %60 = vector.extract_strided_slice %58 {offsets = [0, 8], sizes = [8, 8], strides = [1, 1]} : vector<8x32xbf16> to vector<8x8xbf16>
      %61 = vector.extract_strided_slice %58 {offsets = [0, 16], sizes = [8, 8], strides = [1, 1]} : vector<8x32xbf16> to vector<8x8xbf16>
      %62 = vector.extract_strided_slice %58 {offsets = [0, 24], sizes = [8, 8], strides = [1, 1]} : vector<8x32xbf16> to vector<8x8xbf16>
      %63 = vector.shape_cast %59 : vector<8x8xbf16> to vector<1x8x8xbf16>
      %64 = vector.shape_cast %60 : vector<8x8xbf16> to vector<1x8x8xbf16>
      %65 = vector.shape_cast %61 : vector<8x8xbf16> to vector<1x8x8xbf16>
      %66 = vector.shape_cast %62 : vector<8x8xbf16> to vector<1x8x8xbf16>
      %67 = tpu.concatenate %63, %64, %65, %66 in 0 : vector<1x8x8xbf16>, vector<1x8x8xbf16>, vector<1x8x8xbf16>, vector<1x8x8xbf16> -> vector<4x8x8xbf16>
      %c0_37 = arith.constant 0 : index
      %c0_38 = arith.constant 0 : index
      %c0_39 = arith.constant 0 : index
      %68 = vector.load %arg10[%c0_37, %c0_38, %c0_39] : memref<4x8x8xbf16, #tpu.memory_space<vmem>>, vector<4x8x8xbf16>
      tpu.vector_store %arg10[%c0_37, %c0_38, %c0_39], %67 {strides = array<i32>} : memref<4x8x8xbf16, #tpu.memory_space<vmem>>, vector<4x8x8xbf16>,
      %cst_40 = arith.constant 0xFF800000 : f32
      %69 = vector.broadcast %cst_40 : f32 to vector<4x8x1xf32>
      %c0_41 = arith.constant 0 : index
      %c0_42 = arith.constant 0 : index
      %c0_43 = arith.constant 0 : index
      %70 = vector.load %arg11[%c0_41, %c0_42, %c0_43] : memref<4x8x1xf32, #tpu.memory_space<vmem>>, vector<4x8x1xf32>
      tpu.vector_store %arg11[%c0_41, %c0_42, %c0_43], %69 {strides = array<i32>} : memref<4x8x1xf32, #tpu.memory_space<vmem>>, vector<4x8x1xf32>,
      %cst_44 = arith.constant 0.000000e+00 : f32
      %71 = vector.broadcast %cst_44 : f32 to vector<4x8x1xf32>
      %c0_45 = arith.constant 0 : index
      %c0_46 = arith.constant 0 : index
      %c0_47 = arith.constant 0 : index
      %72 = vector.load %arg12[%c0_45, %c0_46, %c0_47] : memref<4x8x1xf32, #tpu.memory_space<vmem>>, vector<4x8x1xf32>
      tpu.vector_store %arg12[%c0_45, %c0_46, %c0_47], %71 {strides = array<i32>} : memref<4x8x1xf32, #tpu.memory_space<vmem>>, vector<4x8x1xf32>,
      %cst_48 = arith.constant 0.000000e+00 : f32
      %73 = vector.broadcast %cst_48 : f32 to vector<4x8x8xf32>
      %c0_49 = arith.constant 0 : index
      %c0_50 = arith.constant 0 : index
      %c0_51 = arith.constant 0 : index
      %74 = vector.load %arg13[%c0_49, %c0_50, %c0_51] : memref<4x8x8xf32, #tpu.memory_space<vmem>>, vector<4x8x8xf32>
      tpu.vector_store %arg13[%c0_49, %c0_50, %c0_51], %73 {strides = array<i32>} : memref<4x8x8xf32, #tpu.memory_space<vmem>>, vector<4x8x8xf32>,
    } else {
    }
    %c0 = arith.constant 0 : index
    %c0_1 = arith.constant 0 : index
    %c0_2 = arith.constant 0 : index
    %3 = vector.load %arg4[%c0, %c0_1, %c0_2] : memref<1x8x32xbf16, #tpu.memory_space<vmem>>, vector<1x8x32xbf16>
    %4 = vector.shape_cast %3 : vector<1x8x32xbf16> to vector<8x32xbf16>
    %c0_3 = arith.constant 0 : index
    %c0_4 = arith.constant 0 : index
    %5 = vector.load %arg6[%c0_3, %c0_4] : memref<32x64xbf16, #tpu.memory_space<vmem>>, vector<32x64xbf16>
    %cst = arith.constant dense<0.000000e+00> : vector<8x64xf32>
    %6 = tpu.matmul %4, %5, %cst {dimension_numbers = #tpu.dot_dimension_numbers<[1], [0], [0], [1], [0, 0, 1, 1], [], []>} : vector<8x32xbf16>, vector<32x64xbf16>, vector<8x64xf32> -> vector<8x64xf32>
    %7 = arith.truncf %6 : vector<8x64xf32> to vector<8x64xbf16>
    %8 = vector.extract_strided_slice %7 {offsets = [0, 0], sizes = [8, 8], strides = [1, 1]} : vector<8x64xbf16> to vector<8x8xbf16>
    %9 = vector.extract_strided_slice %7 {offsets = [0, 8], sizes = [8, 8], strides = [1, 1]} : vector<8x64xbf16> to vector<8x8xbf16>
    %10 = vector.extract_strided_slice %7 {offsets = [0, 16], sizes = [8, 8], strides = [1, 1]} : vector<8x64xbf16> to vector<8x8xbf16>
    %11 = vector.extract_strided_slice %7 {offsets = [0, 24], sizes = [8, 8], strides = [1, 1]} : vector<8x64xbf16> to vector<8x8xbf16>
    %12 = vector.shape_cast %8 : vector<8x8xbf16> to vector<1x8x8xbf16>
    %13 = vector.shape_cast %9 : vector<8x8xbf16> to vector<1x8x8xbf16>
    %14 = vector.shape_cast %10 : vector<8x8xbf16> to vector<1x8x8xbf16>
    %15 = vector.shape_cast %11 : vector<8x8xbf16> to vector<1x8x8xbf16>
    %16 = tpu.concatenate %12, %13, %14, %15 in 0 : vector<1x8x8xbf16>, vector<1x8x8xbf16>, vector<1x8x8xbf16>, vector<1x8x8xbf16> -> vector<4x8x8xbf16>
    %17 = vector.extract_strided_slice %7 {offsets = [0, 32], sizes = [8, 8], strides = [1, 1]} : vector<8x64xbf16> to vector<8x8xbf16>
    %18 = vector.extract_strided_slice %7 {offsets = [0, 40], sizes = [8, 8], strides = [1, 1]} : vector<8x64xbf16> to vector<8x8xbf16>
    %19 = vector.extract_strided_slice %7 {offsets = [0, 48], sizes = [8, 8], strides = [1, 1]} : vector<8x64xbf16> to vector<8x8xbf16>
    %20 = vector.extract_strided_slice %7 {offsets = [0, 56], sizes = [8, 8], strides = [1, 1]} : vector<8x64xbf16> to vector<8x8xbf16>
    %21 = vector.shape_cast %17 : vector<8x8xbf16> to vector<1x8x8xbf16>
    %22 = vector.shape_cast %18 : vector<8x8xbf16> to vector<1x8x8xbf16>
    %23 = vector.shape_cast %19 : vector<8x8xbf16> to vector<1x8x8xbf16>
    %24 = vector.shape_cast %20 : vector<8x8xbf16> to vector<1x8x8xbf16>
    %25 = tpu.concatenate %21, %22, %23, %24 in 0 : vector<1x8x8xbf16>, vector<1x8x8xbf16>, vector<1x8x8xbf16>, vector<1x8x8xbf16> -> vector<4x8x8xbf16>
    %c0_5 = arith.constant 0 : index
    %c0_6 = arith.constant 0 : index
    %c0_7 = arith.constant 0 : index
    %26 = vector.load %arg10[%c0_5, %c0_6, %c0_7] : memref<4x8x8xbf16, #tpu.memory_space<vmem>>, vector<4x8x8xbf16>
    "tpu.trace_start"() <{level = 10 : i32, message = "hqd,hkd->hqk"}> : () -> ()
    %cst_8 = arith.constant dense<0.000000e+00> : vector<4x8x8xf32>
    %27 = tpu.matmul %26, %16, %cst_8 {dimension_numbers = #tpu.dot_dimension_numbers<[2], [2], [1], [1], [0, 0, 0, 1, 1, 1], [0], [0]>} : vector<4x8x8xbf16>, vector<4x8x8xbf16>, vector<4x8x8xf32> -> vector<4x8x8xf32>
    "tpu.trace_stop"() : () -> ()
    %c0_9 = arith.constant 0 : index
    %c0_10 = arith.constant 0 : index
    %c0_11 = arith.constant 0 : index
    %28 = vector.load %arg11[%c0_9, %c0_10, %c0_11] : memref<4x8x1xf32, #tpu.memory_space<vmem>>, vector<4x8x1xf32>
    %cst_12 = arith.constant dense<0xFF800000> : vector<4x8xf32>
    %29 = vector.multi_reduction <maximumf>, %27, %cst_12 [2] : vector<4x8x8xf32> to vector<4x8xf32>
    %30 = vector.shape_cast %29 : vector<4x8xf32> to vector<4x8x1xf32>
    %31 = arith.maximumf %28, %30 : vector<4x8x1xf32>
    %32 = arith.subf %28, %31 : vector<4x8x1xf32>
    %33 = math.exp %32 : vector<4x8x1xf32>
    %34 = vector.broadcast %31 : vector<4x8x1xf32> to vector<4x8x8xf32>
    %35 = arith.subf %27, %34 : vector<4x8x8xf32>
    %36 = math.exp %35 : vector<4x8x8xf32>
    %c0_13 = arith.constant 0 : index
    %c0_14 = arith.constant 0 : index
    %c0_15 = arith.constant 0 : index
    %37 = vector.load %arg12[%c0_13, %c0_14, %c0_15] : memref<4x8x1xf32, #tpu.memory_space<vmem>>, vector<4x8x1xf32>
    %38 = arith.mulf %33, %37 : vector<4x8x1xf32>
    %cst_16 = arith.constant dense<0.000000e+00> : vector<4x8xf32>
    %39 = vector.multi_reduction <add>, %36, %cst_16 [2] : vector<4x8x8xf32> to vector<4x8xf32>
    %40 = vector.shape_cast %39 : vector<4x8xf32> to vector<4x8x1xf32>
    %41 = arith.addf %38, %40 : vector<4x8x1xf32>
    %c0_17 = arith.constant 0 : index
    %c0_18 = arith.constant 0 : index
    %c0_19 = arith.constant 0 : index
    %42 = vector.load %arg12[%c0_17, %c0_18, %c0_19] : memref<4x8x1xf32, #tpu.memory_space<vmem>>, vector<4x8x1xf32>
    tpu.vector_store %arg12[%c0_17, %c0_18, %c0_19], %41 {strides = array<i32>} : memref<4x8x1xf32, #tpu.memory_space<vmem>>, vector<4x8x1xf32>,
    %c0_20 = arith.constant 0 : index
    %c0_21 = arith.constant 0 : index
    %c0_22 = arith.constant 0 : index
    %43 = vector.load %arg13[%c0_20, %c0_21, %c0_22] : memref<4x8x8xf32, #tpu.memory_space<vmem>>, vector<4x8x8xf32>
    %44 = vector.broadcast %33 : vector<4x8x1xf32> to vector<4x8x8xf32>
    %45 = arith.mulf %44, %43 : vector<4x8x8xf32>
    %46 = arith.truncf %36 : vector<4x8x8xf32> to vector<4x8x8xbf16>
    "tpu.trace_start"() <{level = 10 : i32, message = "hqk,hkd->hqd"}> : () -> ()
    %cst_23 = arith.constant dense<0.000000e+00> : vector<4x8x8xf32>
    %47 = tpu.matmul %46, %25, %cst_23 {dimension_numbers = #tpu.dot_dimension_numbers<[2], [1], [1], [2], [0, 0, 0, 1, 1, 2], [0], [0]>} : vector<4x8x8xbf16>, vector<4x8x8xbf16>, vector<4x8x8xf32> -> vector<4x8x8xf32>
    "tpu.trace_stop"() : () -> ()
    %48 = arith.addf %45, %47 : vector<4x8x8xf32>
    %c0_24 = arith.constant 0 : index
    %c0_25 = arith.constant 0 : index
    %c0_26 = arith.constant 0 : index
    %49 = vector.load %arg13[%c0_24, %c0_25, %c0_26] : memref<4x8x8xf32, #tpu.memory_space<vmem>>, vector<4x8x8xf32>
    tpu.vector_store %arg13[%c0_24, %c0_25, %c0_26], %48 {strides = array<i32>} : memref<4x8x8xf32, #tpu.memory_space<vmem>>, vector<4x8x8xf32>,
    %c0_27 = arith.constant 0 : index
    %c0_28 = arith.constant 0 : index
    %c0_29 = arith.constant 0 : index
    %50 = vector.load %arg11[%c0_27, %c0_28, %c0_29] : memref<4x8x1xf32, #tpu.memory_space<vmem>>, vector<4x8x1xf32>
    tpu.vector_store %arg11[%c0_27, %c0_28, %c0_29], %31 {strides = array<i32>} : memref<4x8x1xf32, #tpu.memory_space<vmem>>, vector<4x8x1xf32>,
    %c1_i32 = arith.constant 1 : i32
    %51 = arith.cmpi eq, %arg2, %c1_i32 : i32
    %52 = arith.extui %51 : i1 to i32
    %c0_i32_30 = arith.constant 0 : i32
    %53 = arith.cmpi ne, %52, %c0_i32_30 : i32
    scf.if %53 {
      %c0_31 = arith.constant 0 : index
      %c0_32 = arith.constant 0 : index
      %c0_33 = arith.constant 0 : index
      %54 = vector.load %arg13[%c0_31, %c0_32, %c0_33] : memref<4x8x8xf32, #tpu.memory_space<vmem>>, vector<4x8x8xf32>
      %c0_34 = arith.constant 0 : index
      %c0_35 = arith.constant 0 : index
      %c0_36 = arith.constant 0 : index
      %55 = vector.load %arg12[%c0_34, %c0_35, %c0_36] : memref<4x8x1xf32, #tpu.memory_space<vmem>>, vector<4x8x1xf32>
      %56 = tpu.reciprocal %55 : vector<4x8x1xf32> -> vector<4x8x1xf32>
      %57 = vector.broadcast %56 : vector<4x8x1xf32> to vector<4x8x8xf32>
      %58 = arith.mulf %54, %57 : vector<4x8x8xf32>
      %59 = vector.extract_strided_slice %58 {offsets = [0, 0, 0], sizes = [1, 8, 8], strides = [1, 1, 1]} : vector<4x8x8xf32> to vector<1x8x8xf32>
      %60 = vector.shape_cast %59 : vector<1x8x8xf32> to vector<8x8xf32>
      %61 = vector.extract_strided_slice %58 {offsets = [1, 0, 0], sizes = [1, 8, 8], strides = [1, 1, 1]} : vector<4x8x8xf32> to vector<1x8x8xf32>
      %62 = vector.shape_cast %61 : vector<1x8x8xf32> to vector<8x8xf32>
      %63 = vector.extract_strided_slice %58 {offsets = [2, 0, 0], sizes = [1, 8, 8], strides = [1, 1, 1]} : vector<4x8x8xf32> to vector<1x8x8xf32>
      %64 = vector.shape_cast %63 : vector<1x8x8xf32> to vector<8x8xf32>
      %65 = vector.extract_strided_slice %58 {offsets = [3, 0, 0], sizes = [1, 8, 8], strides = [1, 1, 1]} : vector<4x8x8xf32> to vector<1x8x8xf32>
      %66 = vector.shape_cast %65 : vector<1x8x8xf32> to vector<8x8xf32>
      %67 = tpu.concatenate %60, %62, %64, %66 in 1 : vector<8x8xf32>, vector<8x8xf32>, vector<8x8xf32>, vector<8x8xf32> -> vector<8x32xf32>
      %68 = arith.truncf %67 : vector<8x32xf32> to vector<8x32xbf16>
      %c0_37 = arith.constant 0 : index
      %c0_38 = arith.constant 0 : index
      %69 = vector.load %arg7[%c0_37, %c0_38] : memref<32x32xbf16, #tpu.memory_space<vmem>>, vector<32x32xbf16>
      %cst_39 = arith.constant dense<0.000000e+00> : vector<8x32xf32>
      %70 = tpu.matmul %68, %69, %cst_39 {dimension_numbers = #tpu.dot_dimension_numbers<[1], [0], [0], [1], [0, 0, 1, 1], [], []>} : vector<8x32xbf16>, vector<32x32xbf16>, vector<8x32xf32> -> vector<8x32xf32>
      %c0_40 = arith.constant 0 : index
      %c0_41 = arith.constant 0 : index
      %71 = vector.load %arg8[%c0_40, %c0_41] : memref<1x32xf32, #tpu.memory_space<vmem>>, vector<1x32xf32>
      %72 = vector.broadcast %71 : vector<1x32xf32> to vector<8x32xf32>
      %73 = arith.addf %70, %72 : vector<8x32xf32>
      %c0_42 = arith.constant 0 : index
      %c0_43 = arith.constant 0 : index
      %c0_44 = arith.constant 0 : index
      %74 = vector.load %arg9[%c0_42, %c0_43, %c0_44] : memref<1x8x32xf32, #tpu.memory_space<vmem>>, vector<1x8x32xf32>
      %75 = vector.shape_cast %74 : vector<1x8x32xf32> to vector<8x32xf32>
      %76 = vector.shape_cast %73 : vector<8x32xf32> to vector<1x8x32xf32>
      tpu.vector_store %arg9[%c0_42, %c0_43, %c0_44], %76 {strides = array<i32>} : memref<1x8x32xf32, #tpu.memory_space<vmem>>, vector<1x8x32xf32>,
    } else {
    }
    return
  }
  func.func @transform_0(%arg0: i32, %arg1: i32, %arg2: i32) -> (i32, i32, i32) {
    %c0_i32 = arith.constant 0 : i32
    %c0_i32_0 = arith.constant 0 : i32
    return %arg0, %arg1, %c0_i32 : i32, i32, i32
  }
  func.func @transform_1(%arg0: i32, %arg1: i32, %arg2: i32) -> (i32, i32, i32) {
    %c0_i32 = arith.constant 0 : i32
    %c0_i32_0 = arith.constant 0 : i32
    return %arg0, %arg2, %c0_i32 : i32, i32, i32
  }
  func.func @transform_2(%arg0: i32, %arg1: i32, %arg2: i32) -> (i32, i32) {
    %c0_i32 = arith.constant 0 : i32
    %c0_i32_0 = arith.constant 0 : i32
    %c0_i32_1 = arith.constant 0 : i32
    return %c0_i32, %c0_i32_0 : i32, i32
  }
  func.func @transform_3(%arg0: i32, %arg1: i32, %arg2: i32) -> (i32, i32) {
    %c0_i32 = arith.constant 0 : i32
    %c0_i32_0 = arith.constant 0 : i32
    %c0_i32_1 = arith.constant 0 : i32
    return %c0_i32, %c0_i32_0 : i32, i32
  }
  func.func @transform_4(%arg0: i32, %arg1: i32, %arg2: i32) -> (i32, i32) {
    %c0_i32 = arith.constant 0 : i32
    %c0_i32_0 = arith.constant 0 : i32
    %c0_i32_1 = arith.constant 0 : i32
    return %c0_i32, %c0_i32_0 : i32, i32
  }
  func.func @transform_5(%arg0: i32, %arg1: i32, %arg2: i32) -> (i32, i32) {
    %c0_i32 = arith.constant 0 : i32
    %c0_i32_0 = arith.constant 0 : i32
    %c0_i32_1 = arith.constant 0 : i32
    return %c0_i32, %c0_i32_0 : i32, i32
  }
  func.func @transform_6(%arg0: i32, %arg1: i32, %arg2: i32) -> (i32, i32, i32) {
    %c0_i32 = arith.constant 0 : i32
    %c0_i32_0 = arith.constant 0 : i32
    return %arg0, %arg1, %c0_i32 : i32, i32, i32
  }
}

</mosaic_0001>

<llo_original>
// kernel: tpu_custom_call.1
$region0: #{tpu_custom_call.1}
  #allocation0 [shape = 'u32[]', space=smem, size = 0x4, offset = 0x4, fixed_abs, tag = 'smem constant byte address 0x4 - core index']
  #allocation1 [shape = 'u32[144,128]{1,0:T(1,128)}', space=vmem, size = 0x12000, scoped, tag = 'internal scratch']
  #allocation2 [shape = 'bf16[4,8,8]{2,1,0:T(8,128)(2,1)}', space=vmem, size = 0x2000, scoped, tag = 'scratch operand']
  #allocation3 [shape = 'f32[4,8,1]{2,1,0:T(8,128)}', space=vmem, size = 0x4000, scoped, tag = 'scratch operand']
  #allocation4 [shape = 'f32[4,8,1]{2,1,0:T(8,128)}', space=vmem, size = 0x4000, scoped, tag = 'scratch operand']
  #allocation5 [shape = 'f32[4,8,8]{2,1,0:T(8,128)}', space=vmem, size = 0x4000, scoped, tag = 'scratch operand']
  %s0 = inlined_call_operand.hbm [shape: bf16[2,16,32], index: 0, kind: input, shape index: {}]
  %s1 = inlined_call_operand.hbm [shape: bf16[2,16,32], index: 1, kind: input, shape index: {}]
  %s2 = inlined_call_operand.hbm [shape: bf16[32,32], index: 2, kind: input, shape index: {}]
  %s3 = inlined_call_operand.hbm [shape: bf16[32,64], index: 3, kind: input, shape index: {}]
  %s4 = inlined_call_operand.hbm [shape: bf16[32,32], index: 4, kind: input, shape index: {}]
  %s5 = inlined_call_operand.vmem [shape: f32[1,32], index: 5, kind: input, shape index: {}]
  %s6 = inlined_call_operand.hbm [shape: f32[2,16,32], index: 6, kind: output, shape index: {}]
  %s7 = sld [smem:[#allocation0]]
  $region85: #{tpu_custom_call.1} parent=0
    _
  %s9 = ssub.s32 1, %s7
  %s10 = scalar_select 0, %s9, %s7
  $region1: #{tpu_custom_call.1} parent=0
    #allocation6 [shape = 'u8[4096]{0}', space=vmem, size = 0x1000, scoped, tag = 'input window, operand 0']
    #allocation7 [shape = 's32[2]{0}', space=sflag, size = 0x8, scoped, tag = 'scoped memory for tpu_custom_call.1']
    #allocation8 [shape = 's32[2]{0}', space=sflag, size = 0x8, scoped, tag = 'scoped memory for tpu_custom_call.1']
    #allocation9 [shape = 'u8[4096]{0}', space=vmem, size = 0x1000, scoped, tag = 'input window, operand 1']
    #allocation10 [shape = 's32[2]{0}', space=sflag, size = 0x8, scoped, tag = 'scoped memory for tpu_custom_call.1']
    #allocation11 [shape = 'u8[8192]{0}', space=vmem, size = 0x2000, scoped, tag = 'input window, operand 2, single buffered']
    #allocation12 [shape = 'u8[8192]{0}', space=vmem, size = 0x2000, scoped, tag = 'input window, operand 3, single buffered']
    #allocation13 [shape = 's32[1]{0}', space=sflag, size = 0x4, scoped, tag = 'scoped memory for tpu_custom_call.1']
    #allocation14 [shape = 'u8[8192]{0}', space=vmem, size = 0x2000, scoped, tag = 'input window, operand 4, single buffered']
    #allocation15 [shape = 'u8[8192]{0}', space=vmem, size = 0x2000, scoped, tag = 'output window, operand 0']
    %11 = vsyncpa [#allocation7], 0
    %s12 = scalar_lea.sflag [#allocation7], 1
    %13 = vsyncpa %s12, 0
    %14 = vsyncpa [#allocation10], 0
    %s15 = scalar_lea.sflag [#allocation10], 1
    %16 = vsyncpa %s15, 0
    %17 = vsyncpa [#allocation13], 0
    %18 = vsyncpa [#allocation8], 0
    %s19 = scalar_lea.sflag [#allocation8], 1
    %20 = vsyncpa %s19, 0
    loop: start=0, step=1, limit=10
    $region2: #{tpu_custom_call.1} parent=1 // loop_pre_header
      _
    $region3: #{tpu_custom_call.1} parent=1 // loop_header
      %s22 = sphi 0, %s26
      %p23 = scmp.ge.s32.totalorder %s22, 10
      %s29 = sphi 0, %s48
      %s30 = sphi 0, %s44
      %s31 = sphi 0, %s40
      %s32 = sphi 0, %s29
      %s33 = sphi 0, %s30
      %s34 = sphi 0, %s31
      %s35 = sphi 0, %s32
      %s36 = sphi 0, %s33
      %s37 = sphi 0, %s34
      %s53 = sphi 0, %s55
      %s56 = sphi 0, %s53
      %s57 = sphi 0, %s56
      %s73 = sphi 0, %s57
      %s81 = sphi 0, %s83
      %s84 = sphi 0, %s81
      %s85 = sphi 0, %s84
      %s101 = sphi 0, %s85
      %s105 = sphi 0, %s105
      %s107 = sphi 0, %s105
      %s108 = sphi 0, %s107
      %s122 = sphi 0, %s108
      %s126 = sphi 0, %s126
      %s128 = sphi 0, %s126
      %s129 = sphi 0, %s128
      %s143 = sphi 0, %s129
      %s147 = sphi 0, %s147
      %s149 = sphi 0, %s147
      %s150 = sphi 0, %s149
      %s164 = sphi 0, %s150
      %s168 = sphi 0, %s168
      %s170 = sphi 0, %s168
      %s171 = sphi 0, %s170
      %s185 = sphi 0, %s171
      %s193 = sphi 0, %s195
      %s196 = sphi 0, %s193
      %s197 = sphi 0, %s196
      %s213 = sphi 0, %s197
    $region4: #{tpu_custom_call.1} parent=1 // loop_header_branch
      %25 = sbr.rel (%p23) target = $region8
    $region5: #{tpu_custom_call.1} parent=1 // loop_body
      %s27 = ssub.s32 %s22, 1
      %s28 = ssub.s32 %s22, 2
      %s38 = sadd.s32 1, %s31
      %p39 = scmp.ge.s32.totalorder %s38, 2
      %s40 = scalar_select %p39, 0, %s38
      %s41 = sadd.s32 1, %s30
      %s42 = scalar_select %p39, %s41, %s30
      %p43 = scmp.ge.s32.totalorder %s42, 2
      %s44 = scalar_select %p43, 0, %s42
      %s45 = sadd.s32 1, %s29
      %s46 = scalar_select %p43, %s45, %s29
      %p47 = scmp.ge.s32.totalorder %s46, 2
      %s48 = scalar_select %p47, 0, %s46
      %s49 = ssub.s32 %s29, %s48
      %s50 = ssub.s32 %s30, %s44
      %s51 = sor.u32 %s49, %s50
      %p52 = scmp.eq.s32.totalorder %s51, 0
      %s54 = sadd.s32 %s53, 1
      %s55 = scalar_select %p52, %s53, %s54
      %p58 = pneg %p52
      %p59 = scmp.eq.s32.totalorder %s22, 7
      %p60 = por %p58, %p59
      %p61 = scmp.ne.s32.totalorder %s53, %s56
      %p62 = scmp.eq.s32.totalorder %s22, 0
      %p63 = por %p61, %p62
      %p64 = scmp.ne.s32.totalorder %s53, %s56
      %p65 = scmp.eq.s32.totalorder %s27, 7
      %p66 = por %p64, %p65
      %p67 = scmp.ne.s32.totalorder %s56, %s57
      %p68 = scmp.eq.s32.totalorder %s27, 0
      %p69 = por %p67, %p68
      %p70 = scmp.ne.s32.totalorder %s56, %s57
      %p71 = scmp.eq.s32.totalorder %s28, 7
      %p72 = por %p70, %p71
      %p74 = scmp.ne.s32.totalorder %s57, %s73
      %p75 = scmp.eq.s32.totalorder %s28, 0
      %p76 = por %p74, %p75
      %s77 = ssub.s32 %s29, %s48
      %s78 = ssub.s32 %s31, %s40
      %s79 = sor.u32 %s77, %s78
      %p80 = scmp.eq.s32.totalorder %s79, 0
      %s82 = sadd.s32 %s81, 1
      %s83 = scalar_select %p80, %s81, %s82
      %p86 = pneg %p80
      %p87 = scmp.eq.s32.totalorder %s22, 7
      %p88 = por %p86, %p87
      %p89 = scmp.ne.s32.totalorder %s81, %s84
      %p90 = scmp.eq.s32.totalorder %s22, 0
      %p91 = por %p89, %p90
      %p92 = scmp.ne.s32.totalorder %s81, %s84
      %p93 = scmp.eq.s32.totalorder %s27, 7
      %p94 = por %p92, %p93
      %p95 = scmp.ne.s32.totalorder %s84, %s85
      %p96 = scmp.eq.s32.totalorder %s27, 0
      %p97 = por %p95, %p96
      %p98 = scmp.ne.s32.totalorder %s84, %s85
      %p99 = scmp.eq.s32.totalorder %s28, 7
      %p100 = por %p98, %p99
      %p102 = scmp.ne.s32.totalorder %s85, %s101
      %p103 = scmp.eq.s32.totalorder %s28, 0
      %p104 = por %p102, %p103
      %s106 = sadd.s32 %s105, 1
      %p109 = scmp.eq.s32.totalorder %s22, 7
      %p110 = scmp.ne.s32.totalorder %s105, %s107
      %p111 = scmp.eq.s32.totalorder %s22, 0
      %p112 = por %p110, %p111
      %p113 = scmp.ne.s32.totalorder %s105, %s107
      %p114 = scmp.eq.s32.totalorder %s27, 7
      %p115 = por %p113, %p114
      %p116 = scmp.ne.s32.totalorder %s107, %s108
      %p117 = scmp.eq.s32.totalorder %s27, 0
      %p118 = por %p116, %p117
      %p119 = scmp.ne.s32.totalorder %s107, %s108
      %p120 = scmp.eq.s32.totalorder %s28, 7
      %p121 = por %p119, %p120
      %p123 = scmp.ne.s32.totalorder %s108, %s122
      %p124 = scmp.eq.s32.totalorder %s28, 0
      %p125 = por %p123, %p124
      %s127 = sadd.s32 %s126, 1
      %p130 = scmp.eq.s32.totalorder %s22, 7
      %p131 = scmp.ne.s32.totalorder %s126, %s128
      %p132 = scmp.eq.s32.totalorder %s22, 0
      %p133 = por %p131, %p132
      %p134 = scmp.ne.s32.totalorder %s126, %s128
      %p135 = scmp.eq.s32.totalorder %s27, 7
      %p136 = por %p134, %p135
      %p137 = scmp.ne.s32.totalorder %s128, %s129
      %p138 = scmp.eq.s32.totalorder %s27, 0
      %p139 = por %p137, %p138
      %p140 = scmp.ne.s32.totalorder %s128, %s129
      %p141 = scmp.eq.s32.totalorder %s28, 7
      %p142 = por %p140, %p141
      %p144 = scmp.ne.s32.totalorder %s129, %s143
      %p145 = scmp.eq.s32.totalorder %s28, 0
      %p146 = por %p144, %p145
      %s148 = sadd.s32 %s147, 1
      %p151 = scmp.eq.s32.totalorder %s22, 7
      %p152 = scmp.ne.s32.totalorder %s147, %s149
      %p153 = scmp.eq.s32.totalorder %s22, 0
      %p154 = por %p152, %p153
      %p155 = scmp.ne.s32.totalorder %s147, %s149
      %p156 = scmp.eq.s32.totalorder %s27, 7
      %p157 = por %p155, %p156
      %p158 = scmp.ne.s32.totalorder %s149, %s150
      %p159 = scmp.eq.s32.totalorder %s27, 0
      %p160 = por %p158, %p159
      %p161 = scmp.ne.s32.totalorder %s149, %s150
      %p162 = scmp.eq.s32.totalorder %s28, 7
      %p163 = por %p161, %p162
      %p165 = scmp.ne.s32.totalorder %s150, %s164
      %p166 = scmp.eq.s32.totalorder %s28, 0
      %p167 = por %p165, %p166
      %s169 = sadd.s32 %s168, 1
      %p172 = scmp.eq.s32.totalorder %s22, 7
      %p173 = scmp.ne.s32.totalorder %s168, %s170
      %p174 = scmp.eq.s32.totalorder %s22, 0
      %p175 = por %p173, %p174
      %p176 = scmp.ne.s32.totalorder %s168, %s170
      %p177 = scmp.eq.s32.totalorder %s27, 7
      %p178 = por %p176, %p177
      %p179 = scmp.ne.s32.totalorder %s170, %s171
      %p180 = scmp.eq.s32.totalorder %s27, 0
      %p181 = por %p179, %p180
      %p182 = scmp.ne.s32.totalorder %s170, %s171
      %p183 = scmp.eq.s32.totalorder %s28, 7
      %p184 = por %p182, %p183
      %p186 = scmp.ne.s32.totalorder %s171, %s185
      %p187 = scmp.eq.s32.totalorder %s28, 0
      %p188 = por %p186, %p187
      %s189 = ssub.s32 %s29, %s48
      %s190 = ssub.s32 %s30, %s44
      %s191 = sor.u32 %s189, %s190
      %p192 = scmp.eq.s32.totalorder %s191, 0
      %s194 = sadd.s32 %s193, 1
      %s195 = scalar_select %p192, %s193, %s194
      %p198 = pneg %p192
      %p199 = scmp.eq.s32.totalorder %s22, 7
      %p200 = por %p198, %p199
      %p201 = scmp.ne.s32.totalorder %s193, %s196
      %p202 = scmp.eq.s32.totalorder %s22, 0
      %p203 = por %p201, %p202
      %p204 = scmp.ne.s32.totalorder %s193, %s196
      %p205 = scmp.eq.s32.totalorder %s27, 7
      %p206 = por %p204, %p205
      %p207 = scmp.ne.s32.totalorder %s196, %s197
      %p208 = scmp.eq.s32.totalorder %s27, 0
      %p209 = por %p207, %p208
      %p210 = scmp.ne.s32.totalorder %s196, %s197
      %p211 = scmp.eq.s32.totalorder %s28, 7
      %p212 = por %p210, %p211
      %p214 = scmp.ne.s32.totalorder %s197, %s213
      %p215 = scmp.eq.s32.totalorder %s28, 0
      %p216 = por %p214, %p215
      %p217 = scmp.le.s32.totalorder 1, %s22
      %p218 = scmp.lt.s32.totalorder %s22, 9
      %p219 = pnand %p217, %p218
      %p220 = pneg %p219
      // Predicated region
      $region9: #{tpu_custom_call.1} parent=5 // pred_check
        _
      $region10: #{tpu_custom_call.1} parent=5 // pred_check_branch
        %222 = sbr.rel (%p219) target = $region12
      $region11: #{tpu_custom_call.1} parent=5 // pred_region
        %s223 = ssub.s32 %s22, 1
        // Predicated region
        $region13: #{tpu_custom_call.1} parent=11 // pred_check
          %p224 = pneg %p118
        $region14: #{tpu_custom_call.1} parent=11 // pred_check_branch
          %226 = sbr.rel (%p224) target = $region16
        $region15: #{tpu_custom_call.1} parent=11 // pred_region
          %s228 = ssub.s32 256, 256
          %229 = vsyncadd [#allocation10], %s228
          %s230 = sshll.u32 [#allocation11], 4
          %s231 = int_to_ptr.vmem [resolvable:$true] %s230
          %236 = dma.hbm_to_vmem [thread:$0]  %s2, 256, %s231, [#allocation10], 64, 64, 4
        $region16: #{tpu_custom_call.1} parent=11 // pred_fallthru
          _
        // Predicated region
        $region17: #{tpu_custom_call.1} parent=11 // pred_check
          %p237 = pneg %p139
        $region18: #{tpu_custom_call.1} parent=11 // pred_check_branch
          %239 = sbr.rel (%p237) target = $region20
        $region19: #{tpu_custom_call.1} parent=11 // pred_region
          %s241 = ssub.s32 256, 256
          %242 = vsyncadd [#allocation13], %s241
          %s243 = sshll.u32 [#allocation12], 4
          %s244 = int_to_ptr.vmem [resolvable:$true] %s243
          %249 = dma.hbm_to_vmem [thread:$0]  %s3, 256, %s244, [#allocation13], 64, 64, 4
        $region20: #{tpu_custom_call.1} parent=11 // pred_fallthru
          _
        // Predicated region
        $region21: #{tpu_custom_call.1} parent=11 // pred_check
          %p250 = pneg %p160
        $region22: #{tpu_custom_call.1} parent=11 // pred_check_branch
          %252 = sbr.rel (%p250) target = $region24
        $region23: #{tpu_custom_call.1} parent=11 // pred_region
          %s254 = ssub.s32 256, 256
          %255 = vsyncadd [#allocation13], %s254
          %s256 = sshll.u32 [#allocation14], 4
          %s257 = int_to_ptr.vmem [resolvable:$true] %s256
          %262 = dma.hbm_to_vmem [thread:$0]  %s4, 256, %s257, [#allocation13], 64, 64, 4
        $region24: #{tpu_custom_call.1} parent=11 // pred_fallthru
          _
        // Predicated region
        $region25: #{tpu_custom_call.1} parent=11 // pred_check
          %p263 = pneg %p181
        $region26: #{tpu_custom_call.1} parent=11 // pred_check_branch
          %265 = sbr.rel (%p263) target = $region28
        $region27: #{tpu_custom_call.1} parent=11 // pred_region
          _
        $region28: #{tpu_custom_call.1} parent=11 // pred_fallthru
          _
      $region12: #{tpu_custom_call.1} parent=5 // pred_fallthru
        _
      %p266 = scmp.lt.s32.totalorder %s22, 8
      // Predicated region
      $region29: #{tpu_custom_call.1} parent=5 // pred_check
        %p267 = pneg %p266
      $region30: #{tpu_custom_call.1} parent=5 // pred_check_branch
        %269 = sbr.rel (%p267) target = $region32
      $region31: #{tpu_custom_call.1} parent=5 // pred_region
        // Predicated region
        $region33: #{tpu_custom_call.1} parent=31 // pred_check
          %p270 = pneg %p63
        $region34: #{tpu_custom_call.1} parent=31 // pred_check_branch
          %272 = sbr.rel (%p270) target = $region36
        $region35: #{tpu_custom_call.1} parent=31 // pred_region
          %s273 = sand.u32 %s53, 1
          %s274 = scalar_lea.sflag [#allocation7], %s273
          %s275 = sand.u32 %s53, 1
          %s276 = smul.addr %s275, 4
          %s277 = scalar_lea.vmem [#allocation6], %s276
          %s279 = ssub.s32 64, 64
          %280 = vsyncadd %s274, %s279
          %s281 = smul.addr %s29, 2
          %s282 = sadd.s32 %s30, %s281
          %s283 = smul.addr %s282, 64
          %s284 = scalar_lea.hbm %s0, %s283
          %s286 = sshll.u32 %s277, 4
          %s287 = int_to_ptr.vmem [resolvable:$true] %s286
          %289 = dma.hbm_to_vmem [thread:$0]  %s284, 64, %s287, %s274
        $region36: #{tpu_custom_call.1} parent=31 // pred_fallthru
          _
        // Predicated region
        $region37: #{tpu_custom_call.1} parent=31 // pred_check
          %p290 = pneg %p91
        $region38: #{tpu_custom_call.1} parent=31 // pred_check_branch
          %292 = sbr.rel (%p290) target = $region40
        $region39: #{tpu_custom_call.1} parent=31 // pred_region
          %s293 = sand.u32 %s22, 1
          %s294 = scalar_lea.sflag [#allocation10], %s293
          %s295 = sand.u32 %s81, 1
          %s296 = smul.addr %s295, 4
          %s297 = scalar_lea.vmem [#allocation9], %s296
          %s299 = ssub.s32 64, 64
          %300 = vsyncadd %s294, %s299
          %s301 = smul.addr %s29, 2
          %s302 = sadd.s32 %s31, %s301
          %s303 = smul.addr %s302, 64
          %s304 = scalar_lea.hbm %s1, %s303
          %s306 = sshll.u32 %s297, 4
          %s307 = int_to_ptr.vmem [resolvable:$true] %s306
          %309 = dma.hbm_to_vmem [thread:$0]  %s304, 64, %s307, %s294
        $region40: #{tpu_custom_call.1} parent=31 // pred_fallthru
          _
      $region32: #{tpu_custom_call.1} parent=5 // pred_fallthru
        _
      %p310 = scmp.le.s32.totalorder 1, %s22
      %p311 = scmp.lt.s32.totalorder %s22, 9
      %p312 = pnand %p310, %p311
      %p313 = pneg %p312
      // Predicated region
      $region41: #{tpu_custom_call.1} parent=5 // pred_check
        _
      $region42: #{tpu_custom_call.1} parent=5 // pred_check_branch
        %315 = sbr.rel (%p312) target = $region44
      $region43: #{tpu_custom_call.1} parent=5 // pred_region
        %s316 = ssub.s32 %s22, 1
        %s317 = sand.u32 %s56, 1
        %s318 = scalar_lea.sflag [#allocation7], %s317
        %s319 = sand.u32 %s56, 1
        %s320 = smul.addr %s319, 4
        %s321 = scalar_lea.vmem [#allocation6], %s320
        // Predicated region
        $region45: #{tpu_custom_call.1} parent=43 // pred_check
          %p322 = pneg %p69
        $region46: #{tpu_custom_call.1} parent=43 // pred_check_branch
          %324 = sbr.rel (%p322) target = $region48
        $region47: #{tpu_custom_call.1} parent=43 // pred_region
          %325 = dma.done %s318, 64
        $region48: #{tpu_custom_call.1} parent=43 // pred_fallthru
          _
        %s326 = sand.u32 %s27, 1
        %s327 = scalar_lea.sflag [#allocation10], %s326
        %s328 = sand.u32 %s84, 1
        %s329 = smul.addr %s328, 4
        %s330 = scalar_lea.vmem [#allocation9], %s329
        // Predicated region
        $region49: #{tpu_custom_call.1} parent=43 // pred_check
          %p331 = pneg %p97
        $region50: #{tpu_custom_call.1} parent=43 // pred_check_branch
          %333 = sbr.rel (%p331) target = $region52
        $region51: #{tpu_custom_call.1} parent=43 // pred_region
          %334 = dma.done %s327, 64
        $region52: #{tpu_custom_call.1} parent=43 // pred_fallthru
          _
        // Predicated region
        $region53: #{tpu_custom_call.1} parent=43 // pred_check
          %p335 = pneg %p118
        $region54: #{tpu_custom_call.1} parent=43 // pred_check_branch
          %337 = sbr.rel (%p335) target = $region56
        $region55: #{tpu_custom_call.1} parent=43 // pred_region
          %338 = dma.done [#allocation10], 256
        $region56: #{tpu_custom_call.1} parent=43 // pred_fallthru
          _
        // Predicated region
        $region57: #{tpu_custom_call.1} parent=43 // pred_check
          %p339 = pneg %p139
        $region58: #{tpu_custom_call.1} parent=43 // pred_check_branch
          %341 = sbr.rel (%p339) target = $region60
        $region59: #{tpu_custom_call.1} parent=43 // pred_region
          %342 = dma.done [#allocation13], 256
        $region60: #{tpu_custom_call.1} parent=43 // pred_fallthru
          _
        // Predicated region
        $region61: #{tpu_custom_call.1} parent=43 // pred_check
          %p343 = pneg %p160
        $region62: #{tpu_custom_call.1} parent=43 // pred_check_branch
          %345 = sbr.rel (%p343) target = $region64
        $region63: #{tpu_custom_call.1} parent=43 // pred_region
          %346 = dma.done [#allocation13], 256
        $region64: #{tpu_custom_call.1} parent=43 // pred_fallthru
          _
        %s347 = sand.u32 %s56, 1
        %s348 = scalar_lea.sflag [#allocation7], %s347
        %s349 = sand.u32 %s56, 1
        %s350 = smul.addr %s349, 4
        %s351 = scalar_lea.vmem [#allocation6], %s350
        %p352 = pneg %p69
        %p353 = pneg %p66
        %s354 = sand.u32 %s27, 1
        %s355 = scalar_lea.sflag [#allocation10], %s354
        %s356 = sand.u32 %s84, 1
        %s357 = smul.addr %s356, 4
        %s358 = scalar_lea.vmem [#allocation9], %s357
        %p359 = pneg %p97
        %p360 = pneg %p94
        %p361 = pneg %p118
        %p362 = pneg %p115
        %p363 = pneg %p139
        %p364 = pneg %p136
        %p365 = pneg %p160
        %p366 = pneg %p157
        %p367 = pneg %p181
        %p368 = pneg %p178
        %p369 = pneg %p209
        %p370 = pneg %p206
        %s371 = sand.u32 %s196, 1
        %s372 = scalar_lea.sflag [#allocation8], %s371
        %s373 = sand.u32 %s196, 1
        %s374 = smul.addr %s373, 8
        %s375 = scalar_lea.vmem [#allocation15], %s374
        %p377 = scmp.eq.s32.totalorder %s34, 0
        // Predicated region
        $region65: #{tpu_custom_call.1} parent=43 // pred_check
          %p378 = pneg %p377
        $region66: #{tpu_custom_call.1} parent=43 // pred_check_branch
          %380 = sbr.rel (%p378) target = $region68
        $region67: #{tpu_custom_call.1} parent=43 // pred_region
          %v381 = vld [vmem:[%s321] sm:$0xf]
          %v382 = vld [vmem:[#allocation11] sm:$0xf]
          %v383 = vld [vmem:[#allocation11 + $0x4] sm:$0xf]
          %v384 = vld [vmem:[#allocation11 + $0x8] sm:$0xf]
          %v385 = vld [vmem:[#allocation11 + $0xc] sm:$0xf]
          %v390 = vunpack.c.l.b16 %v382
          %v391 = vunpack.c.l.b16 %v383
          %v392 = vunpack.c.l.b16 %v384
          %v393 = vunpack.c.l.b16 %v385
          %v394 = vpack.c.b16 %v391, %v390
          %v395 = vpack.c.b16 %v393, %v392
          %vm398 = vcmask 261120
          %v400 = vsel %vm398, %v381, 0
          %402 = vmatprep.subr.bf16.mxu0 0
          %403 = vmatpush1.bf16.msra.mxu0 %v394
          %404 = vmatprep.subr.bf16.mxu0 0
          %405 = vmatpush1.bf16.msra.mxu0 %v395
          %406 = vmatprep.subr.bf16.mxu0 0
          %407 = vmatpush1.bf16.msra.mxu0 0
          %408 = vmatprep.subr.bf16.mxu0 0
          %409 = vmatpush1.bf16.msra.mxu0 0
          %410 = vmatprep.subr.bf16.mxu0 0
          %411 = vmatpush1.bf16.msra.mxu0 0
          %412 = vmatprep.subr.bf16.mxu0 0
          %413 = vmatpush1.bf16.msra.mxu0 0
          %414 = vmatprep.subr.bf16.mxu0 0
          %415 = vmatpush1.bf16.msra.mxu0 0
          %416 = vmatprep.subr.bf16.mxu0 0
          %417 = vmatpush1.bf16.msra.mxu0 0
          %418 = vmatprep.subr.bf16.mxu0 0
          %419 = vmatpush1.bf16.msra.mxu0 0
          %420 = vmatprep.subr.bf16.mxu0 0
          %421 = vmatpush1.bf16.msra.mxu0 0
          %422 = vmatprep.subr.bf16.mxu0 0
          %423 = vmatpush1.bf16.msra.mxu0 0
          %424 = vmatprep.subr.bf16.mxu0 0
          %425 = vmatpush1.bf16.msra.mxu0 0
          %426 = vmatprep.subr.bf16.mxu0 0
          %427 = vmatpush1.bf16.msra.mxu0 0
          %428 = vmatprep.subr.bf16.mxu0 0
          %429 = vmatpush1.bf16.msra.mxu0 0
          %430 = vmatprep.subr.bf16.mxu0 0
          %431 = vmatpush1.bf16.msra.mxu0 0
          %432 = vmatprep.subr.bf16.mxu0 0
          %433 = vmatpush1.bf16.msra.mxu0 0
          %434 = vmatprep.mubr.bf16.mxu0 0
          %435 = vmatmul.mubr.bf16.gmra.mrb[0].mxu0 %v400
          %v436 = vpop.f32.mrb[0].mxu0
          %v437 = vadd.f32 0.0, %v436
          %v438 = vpop.f32.mrb[0].mxu0
          %v439 = vpop.f32.mrb[0].mxu0
          %v440 = vpop.f32.mrb[0].mxu0
          %441 = vdwg.mxu0
          %v442 = vpack.c.bf16 %v437, %v437
          %444 = vrot.lane.b32.xlu0 %v442, 120
          %v445 = vpop.permute.xlu0 %444
          %447 = vrot.lane.b32.xlu0 %v442, 112
          %v448 = vpop.permute.xlu0 %447
          %450 = vrot.lane.b32.xlu0 %v442, 104
          %v451 = vpop.permute.xlu0 %450
          %vm453 = vcmask 60416
          %454 = vst.msk [vmem:[#allocation2] sm:$0xf] %vm453, %v442
          %455 = vst.msk [vmem:[#allocation2 + $0x4] sm:$0xf] %vm453, %v445
          %456 = vst.msk [vmem:[#allocation2 + $0x8] sm:$0xf] %vm453, %v448
          %457 = vst.msk [vmem:[#allocation2 + $0xc] sm:$0xf] %vm453, %v451
          %vm458 = vcmask 7168
          %459 = vst.msk [vmem:[#allocation3] sm:$0xff] %vm458, -inf
          %460 = vst.msk [vmem:[#allocation3 + $0x8] sm:$0xff] %vm458, -inf
          %461 = vst.msk [vmem:[#allocation3 + $0x10] sm:$0xff] %vm458, -inf
          %462 = vst.msk [vmem:[#allocation3 + $0x18] sm:$0xff] %vm458, -inf
          %463 = vst.msk [vmem:[#allocation4] sm:$0xff] %vm458, 0.0
          %464 = vst.msk [vmem:[#allocation4 + $0x8] sm:$0xff] %vm458, 0.0
          %465 = vst.msk [vmem:[#allocation4 + $0x10] sm:$0xff] %vm458, 0.0
          %466 = vst.msk [vmem:[#allocation4 + $0x18] sm:$0xff] %vm458, 0.0
          %vm467 = vcmask 64512
          %468 = vst.msk [vmem:[#allocation5] sm:$0xff] %vm467, 0.0
          %469 = vst.msk [vmem:[#allocation5 + $0x8] sm:$0xff] %vm467, 0.0
          %470 = vst.msk [vmem:[#allocation5 + $0x10] sm:$0xff] %vm467, 0.0
          %471 = vst.msk [vmem:[#allocation5 + $0x18] sm:$0xff] %vm467, 0.0
        $region68: #{tpu_custom_call.1} parent=43 // pred_fallthru
          _
        %v472 = vld [vmem:[%s330] sm:$0xf]
        %v473 = vld [vmem:[#allocation12] sm:$0xf]
        %v474 = vld [vmem:[#allocation12 + $0x4] sm:$0xf]
        %v475 = vld [vmem:[#allocation12 + $0x8] sm:$0xf]
        %v476 = vld [vmem:[#allocation12 + $0xc] sm:$0xf]
        %v481 = vunpack.c.l.b16 %v473
        %v482 = vunpack.c.l.b16 %v474
        %v483 = vunpack.c.l.b16 %v475
        %v484 = vunpack.c.l.b16 %v476
        %v485 = vpack.c.b16 %v482, %v481
        %v486 = vpack.c.b16 %v484, %v483
        %vm489 = vcmask 261120
        %v491 = vsel %vm489, %v472, 0
        %493 = vmatprep.subr.bf16.mxu0 0
        %494 = vmatpush1.bf16.msra.mxu0 %v485
        %495 = vmatprep.subr.bf16.mxu0 0
        %496 = vmatpush1.bf16.msra.mxu0 %v486
        %497 = vmatprep.subr.bf16.mxu0 0
        %498 = vmatpush1.bf16.msra.mxu0 0
        %499 = vmatprep.subr.bf16.mxu0 0
        %500 = vmatpush1.bf16.msra.mxu0 0
        %501 = vmatprep.subr.bf16.mxu0 0
        %502 = vmatpush1.bf16.msra.mxu0 0
        %503 = vmatprep.subr.bf16.mxu0 0
        %504 = vmatpush1.bf16.msra.mxu0 0
        %505 = vmatprep.subr.bf16.mxu0 0
        %506 = vmatpush1.bf16.msra.mxu0 0
        %507 = vmatprep.subr.bf16.mxu0 0
        %508 = vmatpush1.bf16.msra.mxu0 0
        %509 = vmatprep.subr.bf16.mxu0 0
        %510 = vmatpush1.bf16.msra.mxu0 0
        %511 = vmatprep.subr.bf16.mxu0 0
        %512 = vmatpush1.bf16.msra.mxu0 0
        %513 = vmatprep.subr.bf16.mxu0 0
        %514 = vmatpush1.bf16.msra.mxu0 0
        %515 = vmatprep.subr.bf16.mxu0 0
        %516 = vmatpush1.bf16.msra.mxu0 0
        %517 = vmatprep.subr.bf16.mxu0 0
        %518 = vmatpush1.bf16.msra.mxu0 0
        %519 = vmatprep.subr.bf16.mxu0 0
        %520 = vmatpush1.bf16.msra.mxu0 0
        %521 = vmatprep.subr.bf16.mxu0 0
        %522 = vmatpush1.bf16.msra.mxu0 0
        %523 = vmatprep.subr.bf16.mxu0 0
        %524 = vmatpush1.bf16.msra.mxu0 0
        %525 = vmatprep.mubr.bf16.mxu0 0
        %526 = vmatmul.mubr.bf16.gmra.mrb[0].mxu0 %v491
        %v527 = vpop.f32.mrb[0].mxu0
        %v528 = vadd.f32 0.0, %v527
        %v529 = vpop.f32.mrb[0].mxu0
        %v530 = vpop.f32.mrb[0].mxu0
        %v531 = vpop.f32.mrb[0].mxu0
        %532 = vdwg.mxu0
        %v533 = vpack.c.bf16 %v528, %v528
        %535 = vrot.lane.b32.xlu0 %v533, 120
        %v536 = vpop.permute.xlu0 %535
        %537 = vrot.lane.b32.xlu0 %v533, 112
        %v538 = vpop.permute.xlu0 %537
        %539 = vrot.lane.b32.xlu0 %v533, 104
        %v540 = vpop.permute.xlu0 %539
        %v541 = vld [vmem:[#allocation2] sm:$0xf]
        %v542 = vld [vmem:[#allocation2 + $0x4] sm:$0xf]
        %v543 = vld [vmem:[#allocation2 + $0x8] sm:$0xf]
        %v544 = vld [vmem:[#allocation2 + $0xc] sm:$0xf]
        %vm545 = vcmask 64512
        %v547 = vsel %vm545, %v541, 0
        %v550 = vsel %vm545, %v533, 0
        %552 = vmatprep.subr.bf16.mxu0 0
        %553 = vmatpush1.bf16.xpose.msra.mxu0 %v550
        %554 = vmatprep.subr.bf16.mxu0 0
        %555 = vmatpush1.bf16.xpose.msra.mxu0 0
        %556 = vmatprep.subr.bf16.mxu0 0
        %557 = vmatpush1.bf16.xpose.msra.mxu0 0
        %558 = vmatprep.subr.bf16.mxu0 0
        %559 = vmatpush1.bf16.xpose.msra.mxu0 0
        %560 = vmatprep.subr.bf16.mxu0 0
        %561 = vmatpush1.bf16.xpose.msra.mxu0 0
        %562 = vmatprep.subr.bf16.mxu0 0
        %563 = vmatpush1.bf16.xpose.msra.mxu0 0
        %564 = vmatprep.subr.bf16.mxu0 0
        %565 = vmatpush1.bf16.xpose.msra.mxu0 0
        %566 = vmatprep.subr.bf16.mxu0 0
        %567 = vmatpush1.bf16.xpose.msra.mxu0 0
        %568 = vmatprep.subr.bf16.mxu0 0
        %569 = vmatpush1.bf16.xpose.msra.mxu0 0
        %570 = vmatprep.subr.bf16.mxu0 0
        %571 = vmatpush1.bf16.xpose.msra.mxu0 0
        %572 = vmatprep.subr.bf16.mxu0 0
        %573 = vmatpush1.bf16.xpose.msra.mxu0 0
        %574 = vmatprep.subr.bf16.mxu0 0
        %575 = vmatpush1.bf16.xpose.msra.mxu0 0
        %576 = vmatprep.subr.bf16.mxu0 0
        %577 = vmatpush1.bf16.xpose.msra.mxu0 0
        %578 = vmatprep.subr.bf16.mxu0 0
        %579 = vmatpush1.bf16.xpose.msra.mxu0 0
        %580 = vmatprep.subr.bf16.mxu0 0
        %581 = vmatpush1.bf16.xpose.msra.mxu0 0
        %582 = vmatprep.subr.bf16.mxu0 0
        %583 = vmatpush1.bf16.xpose.msra.mxu0 0
        %584 = vmatprep.mubr.bf16.mxu0 0
        %585 = vmatmul.mubr.bf16.gmra.mrb[0].mxu0 %v547
        %v586 = vpop.f32.mrb[0].mxu0
        %v587 = vadd.f32 0.0, %v586
        %v588 = vpop.f32.mrb[0].mxu0
        %v589 = vpop.f32.mrb[0].mxu0
        %v590 = vpop.f32.mrb[0].mxu0
        %591 = vdwg.mxu0
        %v593 = vsel %vm545, %v542, 0
        %v596 = vsel %vm545, %v536, 0
        %598 = vmatprep.subr.bf16.mxu0 0
        %599 = vmatpush1.bf16.xpose.msra.mxu0 %v596
        %600 = vmatprep.subr.bf16.mxu0 0
        %601 = vmatpush1.bf16.xpose.msra.mxu0 0
        %602 = vmatprep.subr.bf16.mxu0 0
        %603 = vmatpush1.bf16.xpose.msra.mxu0 0
        %604 = vmatprep.subr.bf16.mxu0 0
        %605 = vmatpush1.bf16.xpose.msra.mxu0 0
        %606 = vmatprep.subr.bf16.mxu0 0
        %607 = vmatpush1.bf16.xpose.msra.mxu0 0
        %608 = vmatprep.subr.bf16.mxu0 0
        %609 = vmatpush1.bf16.xpose.msra.mxu0 0
        %610 = vmatprep.subr.bf16.mxu0 0
        %611 = vmatpush1.bf16.xpose.msra.mxu0 0
        %612 = vmatprep.subr.bf16.mxu0 0
        %613 = vmatpush1.bf16.xpose.msra.mxu0 0
        %614 = vmatprep.subr.bf16.mxu0 0
        %615 = vmatpush1.bf16.xpose.msra.mxu0 0
        %616 = vmatprep.subr.bf16.mxu0 0
        %617 = vmatpush1.bf16.xpose.msra.mxu0 0
        %618 = vmatprep.subr.bf16.mxu0 0
        %619 = vmatpush1.bf16.xpose.msra.mxu0 0
        %620 = vmatprep.subr.bf16.mxu0 0
        %621 = vmatpush1.bf16.xpose.msra.mxu0 0
        %622 = vmatprep.subr.bf16.mxu0 0
        %623 = vmatpush1.bf16.xpose.msra.mxu0 0
        %624 = vmatprep.subr.bf16.mxu0 0
        %625 = vmatpush1.bf16.xpose.msra.mxu0 0
        %626 = vmatprep.subr.bf16.mxu0 0
        %627 = vmatpush1.bf16.xpose.msra.mxu0 0
        %628 = vmatprep.subr.bf16.mxu0 0
        %629 = vmatpush1.bf16.xpose.msra.mxu0 0
        %630 = vmatprep.mubr.bf16.mxu0 0
        %631 = vmatmul.mubr.bf16.gmra.mrb[0].mxu0 %v593
        %v632 = vpop.f32.mrb[0].mxu0
        %v633 = vadd.f32 0.0, %v632
        %v634 = vpop.f32.mrb[0].mxu0
        %v635 = vpop.f32.mrb[0].mxu0
        %v636 = vpop.f32.mrb[0].mxu0
        %637 = vdwg.mxu0
        %v639 = vsel %vm545, %v543, 0
        %v642 = vsel %vm545, %v538, 0
        %644 = vmatprep.subr.bf16.mxu0 0
        %645 = vmatpush1.bf16.xpose.msra.mxu0 %v642
        %646 = vmatprep.subr.bf16.mxu0 0
        %647 = vmatpush1.bf16.xpose.msra.mxu0 0
        %648 = vmatprep.subr.bf16.mxu0 0
        %649 = vmatpush1.bf16.xpose.msra.mxu0 0
        %650 = vmatprep.subr.bf16.mxu0 0
        %651 = vmatpush1.bf16.xpose.msra.mxu0 0
        %652 = vmatprep.subr.bf16.mxu0 0
        %653 = vmatpush1.bf16.xpose.msra.mxu0 0
        %654 = vmatprep.subr.bf16.mxu0 0
        %655 = vmatpush1.bf16.xpose.msra.mxu0 0
        %656 = vmatprep.subr.bf16.mxu0 0
        %657 = vmatpush1.bf16.xpose.msra.mxu0 0
        %658 = vmatprep.subr.bf16.mxu0 0
        %659 = vmatpush1.bf16.xpose.msra.mxu0 0
        %660 = vmatprep.subr.bf16.mxu0 0
        %661 = vmatpush1.bf16.xpose.msra.mxu0 0
        %662 = vmatprep.subr.bf16.mxu0 0
        %663 = vmatpush1.bf16.xpose.msra.mxu0 0
        %664 = vmatprep.subr.bf16.mxu0 0
        %665 = vmatpush1.bf16.xpose.msra.mxu0 0
        %666 = vmatprep.subr.bf16.mxu0 0
        %667 = vmatpush1.bf16.xpose.msra.mxu0 0
        %668 = vmatprep.subr.bf16.mxu0 0
        %669 = vmatpush1.bf16.xpose.msra.mxu0 0
        %670 = vmatprep.subr.bf16.mxu0 0
        %671 = vmatpush1.bf16.xpose.msra.mxu0 0
        %672 = vmatprep.subr.bf16.mxu0 0
        %673 = vmatpush1.bf16.xpose.msra.mxu0 0
        %674 = vmatprep.subr.bf16.mxu0 0
        %675 = vmatpush1.bf16.xpose.msra.mxu0 0
        %676 = vmatprep.mubr.bf16.mxu0 0
        %677 = vmatmul.mubr.bf16.gmra.mrb[0].mxu0 %v639
        %v678 = vpop.f32.mrb[0].mxu0
        %v679 = vadd.f32 0.0, %v678
        %v680 = vpop.f32.mrb[0].mxu0
        %v681 = vpop.f32.mrb[0].mxu0
        %v682 = vpop.f32.mrb[0].mxu0
        %683 = vdwg.mxu0
        %v685 = vsel %vm545, %v544, 0
        %v688 = vsel %vm545, %v540, 0
        %690 = vmatprep.subr.bf16.mxu0 0
        %691 = vmatpush1.bf16.xpose.msra.mxu0 %v688
        %692 = vmatprep.subr.bf16.mxu0 0
        %693 = vmatpush1.bf16.xpose.msra.mxu0 0
        %694 = vmatprep.subr.bf16.mxu0 0
        %695 = vmatpush1.bf16.xpose.msra.mxu0 0
        %696 = vmatprep.subr.bf16.mxu0 0
        %697 = vmatpush1.bf16.xpose.msra.mxu0 0
        %698 = vmatprep.subr.bf16.mxu0 0
        %699 = vmatpush1.bf16.xpose.msra.mxu0 0
        %700 = vmatprep.subr.bf16.mxu0 0
        %701 = vmatpush1.bf16.xpose.msra.mxu0 0
        %702 = vmatprep.subr.bf16.mxu0 0
        %703 = vmatpush1.bf16.xpose.msra.mxu0 0
        %704 = vmatprep.subr.bf16.mxu0 0
        %705 = vmatpush1.bf16.xpose.msra.mxu0 0
        %706 = vmatprep.subr.bf16.mxu0 0
        %707 = vmatpush1.bf16.xpose.msra.mxu0 0
        %708 = vmatprep.subr.bf16.mxu0 0
        %709 = vmatpush1.bf16.xpose.msra.mxu0 0
        %710 = vmatprep.subr.bf16.mxu0 0
        %711 = vmatpush1.bf16.xpose.msra.mxu0 0
        %712 = vmatprep.subr.bf16.mxu0 0
        %713 = vmatpush1.bf16.xpose.msra.mxu0 0
        %714 = vmatprep.subr.bf16.mxu0 0
        %715 = vmatpush1.bf16.xpose.msra.mxu0 0
        %716 = vmatprep.subr.bf16.mxu0 0
        %717 = vmatpush1.bf16.xpose.msra.mxu0 0
        %718 = vmatprep.subr.bf16.mxu0 0
        %719 = vmatpush1.bf16.xpose.msra.mxu0 0
        %720 = vmatprep.subr.bf16.mxu0 0
        %721 = vmatpush1.bf16.xpose.msra.mxu0 0
        %722 = vmatprep.mubr.bf16.mxu0 0
        %723 = vmatmul.mubr.bf16.gmra.mrb[0].mxu0 %v685
        %v724 = vpop.f32.mrb[0].mxu0
        %v725 = vadd.f32 0.0, %v724
        %v726 = vpop.f32.mrb[0].mxu0
        %v727 = vpop.f32.mrb[0].mxu0
        %v728 = vpop.f32.mrb[0].mxu0
        %729 = vdwg.mxu0
        %v730 = vld [vmem:[#allocation3] sm:$0xff]
        %v731 = vld [vmem:[#allocation3 + $0x8] sm:$0xff]
        %v732 = vld [vmem:[#allocation3 + $0x10] sm:$0xff]
        %v733 = vld [vmem:[#allocation3 + $0x18] sm:$0xff]
        %v734 = vsel %vm545, %v587, -inf
        %735 = vmax.xlane.f32.xlu0 %v734
        %v736 = vpop.xlane.xlu0 %735
        %v737 = vsel %vm545, %v633, -inf
        %738 = vmax.xlane.f32.xlu0 %v737
        %v739 = vpop.xlane.xlu0 %738
        %v740 = vsel %vm545, %v679, -inf
        %741 = vmax.xlane.f32.xlu0 %v740
        %v742 = vpop.xlane.xlu0 %741
        %v743 = vsel %vm545, %v725, -inf
        %744 = vmax.xlane.f32.xlu0 %v743
        %v745 = vpop.xlane.xlu0 %744
        %v746 = vmax.f32 %v730, %v736
        %v747 = vmax.f32 %v731, %v739
        %v748 = vmax.f32 %v732, %v742
        %v749 = vmax.f32 %v733, %v745
        %v750 = vsub.f32 %v730, %v746
        %v751 = vsub.f32 %v731, %v747
        %v752 = vsub.f32 %v732, %v748
        %v753 = vsub.f32 %v733, %v749
        %v754 = vmul.f32 %v750, 1.442695
        %v755 = vpow.pop %v754
        %v756 = vmul.f32 %v751, 1.442695
        %v757 = vpow.pop %v756
        %v758 = vmul.f32 %v752, 1.442695
        %v759 = vpow.pop %v758
        %v760 = vmul.f32 %v753, 1.442695
        %v761 = vpow.pop %v760
        %763 = vset.pattern.permute.xlu0 0
        %764 = vperm.xlu0 %763, %v746
        %v765 = vpop.permute.xlu0 %764
        %768 = vset.pattern.permute.xlu0 0
        %769 = vperm.xlu0 %768, %v747
        %v770 = vpop.permute.xlu0 %769
        %773 = vset.pattern.permute.xlu0 0
        %774 = vperm.xlu0 %773, %v748
        %v775 = vpop.permute.xlu0 %774
        %778 = vset.pattern.permute.xlu0 0
        %779 = vperm.xlu0 %778, %v749
        %v780 = vpop.permute.xlu0 %779
        %v782 = vsub.f32 %v587, %v765
        %v783 = vsub.f32 %v633, %v770
        %v784 = vsub.f32 %v679, %v775
        %v785 = vsub.f32 %v725, %v780
        %v786 = vmul.f32 %v782, 1.442695
        %v787 = vpow.pop %v786
        %v788 = vmul.f32 %v783, 1.442695
        %v789 = vpow.pop %v788
        %v790 = vmul.f32 %v784, 1.442695
        %v791 = vpow.pop %v790
        %v792 = vmul.f32 %v785, 1.442695
        %v793 = vpow.pop %v792
        %v794 = vld [vmem:[#allocation4] sm:$0xff]
        %v795 = vld [vmem:[#allocation4 + $0x8] sm:$0xff]
        %v796 = vld [vmem:[#allocation4 + $0x10] sm:$0xff]
        %v797 = vld [vmem:[#allocation4 + $0x18] sm:$0xff]
        %v798 = vmul.f32 %v755, %v794
        %v799 = vmul.f32 %v757, %v795
        %v800 = vmul.f32 %v759, %v796
        %v801 = vmul.f32 %v761, %v797
        %v802 = vsel %vm545, %v787, 0.0
        %803 = vadd.xlane.f32.xlu0 %v802
        %v804 = vpop.xlane.xlu0 %803
        %v805 = vsel %vm545, %v789, 0.0
        %806 = vadd.xlane.f32.xlu0 %v805
        %v807 = vpop.xlane.xlu0 %806
        %v808 = vsel %vm545, %v791, 0.0
        %809 = vadd.xlane.f32.xlu0 %v808
        %v810 = vpop.xlane.xlu0 %809
        %v811 = vsel %vm545, %v793, 0.0
        %812 = vadd.xlane.f32.xlu0 %v811
        %v813 = vpop.xlane.xlu0 %812
        %v814 = vadd.f32 %v798, %v804
        %v815 = vadd.f32 %v799, %v807
        %v816 = vadd.f32 %v800, %v810
        %v817 = vadd.f32 %v801, %v813
        %vm818 = vcmask 7168
        %819 = vst.msk [vmem:[#allocation4] sm:$0xff] %vm818, %v814
        %820 = vst.msk [vmem:[#allocation4 + $0x8] sm:$0xff] %vm818, %v815
        %821 = vst.msk [vmem:[#allocation4 + $0x10] sm:$0xff] %vm818, %v816
        %822 = vst.msk [vmem:[#allocation4 + $0x18] sm:$0xff] %vm818, %v817
        %v823 = vld [vmem:[#allocation5] sm:$0xff]
        %v824 = vld [vmem:[#allocation5 + $0x8] sm:$0xff]
        %v825 = vld [vmem:[#allocation5 + $0x10] sm:$0xff]
        %v826 = vld [vmem:[#allocation5 + $0x18] sm:$0xff]
        %828 = vset.pattern.permute.xlu0 0
        %829 = vperm.xlu0 %828, %v755
        %v830 = vpop.permute.xlu0 %829
        %833 = vset.pattern.permute.xlu0 0
        %834 = vperm.xlu0 %833, %v757
        %v835 = vpop.permute.xlu0 %834
        %838 = vset.pattern.permute.xlu0 0
        %839 = vperm.xlu0 %838, %v759
        %v840 = vpop.permute.xlu0 %839
        %843 = vset.pattern.permute.xlu0 0
        %844 = vperm.xlu0 %843, %v761
        %v845 = vpop.permute.xlu0 %844
        %v847 = vmul.f32 %v830, %v823
        %v848 = vmul.f32 %v835, %v824
        %v849 = vmul.f32 %v840, %v825
        %v850 = vmul.f32 %v845, %v826
        %v851 = vpack.c.bf16 %v787, %v787
        %v852 = vpack.c.bf16 %v789, %v789
        %v853 = vpack.c.bf16 %v791, %v791
        %v854 = vpack.c.bf16 %v793, %v793
        %855 = vrot.lane.b32.xlu0 %v533, 96
        %v856 = vpop.permute.xlu0 %855
        %v858 = vsel %vm545, %v851, 0
        %vm860 = vcmask 1043456
        %v862 = vsel %vm860, %v856, 0
        %864 = vmatprep.subr.bf16.mxu0 0
        %865 = vmatpush1.bf16.msra.mxu0 %v862
        %866 = vmatprep.subr.bf16.mxu0 0
        %867 = vmatpush1.bf16.msra.mxu0 0
        %868 = vmatprep.subr.bf16.mxu0 0
        %869 = vmatpush1.bf16.msra.mxu0 0
        %870 = vmatprep.subr.bf16.mxu0 0
        %871 = vmatpush1.bf16.msra.mxu0 0
        %872 = vmatprep.subr.bf16.mxu0 0
        %873 = vmatpush1.bf16.msra.mxu0 0
        %874 = vmatprep.subr.bf16.mxu0 0
        %875 = vmatpush1.bf16.msra.mxu0 0
        %876 = vmatprep.subr.bf16.mxu0 0
        %877 = vmatpush1.bf16.msra.mxu0 0
        %878 = vmatprep.subr.bf16.mxu0 0
        %879 = vmatpush1.bf16.msra.mxu0 0
        %880 = vmatprep.subr.bf16.mxu0 0
        %881 = vmatpush1.bf16.msra.mxu0 0
        %882 = vmatprep.subr.bf16.mxu0 0
        %883 = vmatpush1.bf16.msra.mxu0 0
        %884 = vmatprep.subr.bf16.mxu0 0
        %885 = vmatpush1.bf16.msra.mxu0 0
        %886 = vmatprep.subr.bf16.mxu0 0
        %887 = vmatpush1.bf16.msra.mxu0 0
        %888 = vmatprep.subr.bf16.mxu0 0
        %889 = vmatpush1.bf16.msra.mxu0 0
        %890 = vmatprep.subr.bf16.mxu0 0
        %891 = vmatpush1.bf16.msra.mxu0 0
        %892 = vmatprep.subr.bf16.mxu0 0
        %893 = vmatpush1.bf16.msra.mxu0 0
        %894 = vmatprep.subr.bf16.mxu0 0
        %895 = vmatpush1.bf16.msra.mxu0 0
        %896 = vmatprep.mubr.bf16.mxu0 0
        %897 = vmatmul.mubr.bf16.gmra.mrb[0].mxu0 %v858
        %v898 = vpop.f32.mrb[0].mxu0
        %v899 = vadd.f32 0.0, %v898
        %v900 = vpop.f32.mrb[0].mxu0
        %v901 = vpop.f32.mrb[0].mxu0
        %v902 = vpop.f32.mrb[0].mxu0
        %903 = vdwg.mxu0
        %904 = vrot.lane.b32.xlu0 %v536, 96
        %v905 = vpop.permute.xlu0 %904
        %v907 = vsel %vm545, %v852, 0
        %v910 = vsel %vm860, %v905, 0
        %912 = vmatprep.subr.bf16.mxu0 0
        %913 = vmatpush1.bf16.msra.mxu0 %v910
        %914 = vmatprep.subr.bf16.mxu0 0
        %915 = vmatpush1.bf16.msra.mxu0 0
        %916 = vmatprep.subr.bf16.mxu0 0
        %917 = vmatpush1.bf16.msra.mxu0 0
        %918 = vmatprep.subr.bf16.mxu0 0
        %919 = vmatpush1.bf16.msra.mxu0 0
        %920 = vmatprep.subr.bf16.mxu0 0
        %921 = vmatpush1.bf16.msra.mxu0 0
        %922 = vmatprep.subr.bf16.mxu0 0
        %923 = vmatpush1.bf16.msra.mxu0 0
        %924 = vmatprep.subr.bf16.mxu0 0
        %925 = vmatpush1.bf16.msra.mxu0 0
        %926 = vmatprep.subr.bf16.mxu0 0
        %927 = vmatpush1.bf16.msra.mxu0 0
        %928 = vmatprep.subr.bf16.mxu0 0
        %929 = vmatpush1.bf16.msra.mxu0 0
        %930 = vmatprep.subr.bf16.mxu0 0
        %931 = vmatpush1.bf16.msra.mxu0 0
        %932 = vmatprep.subr.bf16.mxu0 0
        %933 = vmatpush1.bf16.msra.mxu0 0
        %934 = vmatprep.subr.bf16.mxu0 0
        %935 = vmatpush1.bf16.msra.mxu0 0
        %936 = vmatprep.subr.bf16.mxu0 0
        %937 = vmatpush1.bf16.msra.mxu0 0
        %938 = vmatprep.subr.bf16.mxu0 0
        %939 = vmatpush1.bf16.msra.mxu0 0
        %940 = vmatprep.subr.bf16.mxu0 0
        %941 = vmatpush1.bf16.msra.mxu0 0
        %942 = vmatprep.subr.bf16.mxu0 0
        %943 = vmatpush1.bf16.msra.mxu0 0
        %944 = vmatprep.mubr.bf16.mxu0 0
        %945 = vmatmul.mubr.bf16.gmra.mrb[0].mxu0 %v907
        %v946 = vpop.f32.mrb[0].mxu0
        %v947 = vadd.f32 0.0, %v946
        %v948 = vpop.f32.mrb[0].mxu0
        %v949 = vpop.f32.mrb[0].mxu0
        %v950 = vpop.f32.mrb[0].mxu0
        %951 = vdwg.mxu0
        %952 = vrot.lane.b32.xlu0 %v538, 96
        %v953 = vpop.permute.xlu0 %952
        %v955 = vsel %vm545, %v853, 0
        %v958 = vsel %vm860, %v953, 0
        %960 = vmatprep.subr.bf16.mxu0 0
        %961 = vmatpush1.bf16.msra.mxu0 %v958
        %962 = vmatprep.subr.bf16.mxu0 0
        %963 = vmatpush1.bf16.msra.mxu0 0
        %964 = vmatprep.subr.bf16.mxu0 0
        %965 = vmatpush1.bf16.msra.mxu0 0
        %966 = vmatprep.subr.bf16.mxu0 0
        %967 = vmatpush1.bf16.msra.mxu0 0
        %968 = vmatprep.subr.bf16.mxu0 0
        %969 = vmatpush1.bf16.msra.mxu0 0
        %970 = vmatprep.subr.bf16.mxu0 0
        %971 = vmatpush1.bf16.msra.mxu0 0
        %972 = vmatprep.subr.bf16.mxu0 0
        %973 = vmatpush1.bf16.msra.mxu0 0
        %974 = vmatprep.subr.bf16.mxu0 0
        %975 = vmatpush1.bf16.msra.mxu0 0
        %976 = vmatprep.subr.bf16.mxu0 0
        %977 = vmatpush1.bf16.msra.mxu0 0
        %978 = vmatprep.subr.bf16.mxu0 0
        %979 = vmatpush1.bf16.msra.mxu0 0
        %980 = vmatprep.subr.bf16.mxu0 0
        %981 = vmatpush1.bf16.msra.mxu0 0
        %982 = vmatprep.subr.bf16.mxu0 0
        %983 = vmatpush1.bf16.msra.mxu0 0
        %984 = vmatprep.subr.bf16.mxu0 0
        %985 = vmatpush1.bf16.msra.mxu0 0
        %986 = vmatprep.subr.bf16.mxu0 0
        %987 = vmatpush1.bf16.msra.mxu0 0
        %988 = vmatprep.subr.bf16.mxu0 0
        %989 = vmatpush1.bf16.msra.mxu0 0
        %990 = vmatprep.subr.bf16.mxu0 0
        %991 = vmatpush1.bf16.msra.mxu0 0
        %992 = vmatprep.mubr.bf16.mxu0 0
        %993 = vmatmul.mubr.bf16.gmra.mrb[0].mxu0 %v955
        %v994 = vpop.f32.mrb[0].mxu0
        %v995 = vadd.f32 0.0, %v994
        %v996 = vpop.f32.mrb[0].mxu0
        %v997 = vpop.f32.mrb[0].mxu0
        %v998 = vpop.f32.mrb[0].mxu0
        %999 = vdwg.mxu0
        %1000 = vrot.lane.b32.xlu0 %v540, 96
        %v1001 = vpop.permute.xlu0 %1000
        %v1003 = vsel %vm545, %v854, 0
        %v1006 = vsel %vm860, %v1001, 0
        %1008 = vmatprep.subr.bf16.mxu0 0
        %1009 = vmatpush1.bf16.msra.mxu0 %v1006
        %1010 = vmatprep.subr.bf16.mxu0 0
        %1011 = vmatpush1.bf16.msra.mxu0 0
        %1012 = vmatprep.subr.bf16.mxu0 0
        %1013 = vmatpush1.bf16.msra.mxu0 0
        %1014 = vmatprep.subr.bf16.mxu0 0
        %1015 = vmatpush1.bf16.msra.mxu0 0
        %1016 = vmatprep.subr.bf16.mxu0 0
        %1017 = vmatpush1.bf16.msra.mxu0 0
        %1018 = vmatprep.subr.bf16.mxu0 0
        %1019 = vmatpush1.bf16.msra.mxu0 0
        %1020 = vmatprep.subr.bf16.mxu0 0
        %1021 = vmatpush1.bf16.msra.mxu0 0
        %1022 = vmatprep.subr.bf16.mxu0 0
        %1023 = vmatpush1.bf16.msra.mxu0 0
        %1024 = vmatprep.subr.bf16.mxu0 0
        %1025 = vmatpush1.bf16.msra.mxu0 0
        %1026 = vmatprep.subr.bf16.mxu0 0
        %1027 = vmatpush1.bf16.msra.mxu0 0
        %1028 = vmatprep.subr.bf16.mxu0 0
        %1029 = vmatpush1.bf16.msra.mxu0 0
        %1030 = vmatprep.subr.bf16.mxu0 0
        %1031 = vmatpush1.bf16.msra.mxu0 0
        %1032 = vmatprep.subr.bf16.mxu0 0
        %1033 = vmatpush1.bf16.msra.mxu0 0
        %1034 = vmatprep.subr.bf16.mxu0 0
        %1035 = vmatpush1.bf16.msra.mxu0 0
        %1036 = vmatprep.subr.bf16.mxu0 0
        %1037 = vmatpush1.bf16.msra.mxu0 0
        %1038 = vmatprep.subr.bf16.mxu0 0
        %1039 = vmatpush1.bf16.msra.mxu0 0
        %1040 = vmatprep.mubr.bf16.mxu0 0
        %1041 = vmatmul.mubr.bf16.gmra.mrb[0].mxu0 %v1003
        %v1042 = vpop.f32.mrb[0].mxu0
        %v1043 = vadd.f32 0.0, %v1042
        %v1044 = vpop.f32.mrb[0].mxu0
        %v1045 = vpop.f32.mrb[0].mxu0
        %v1046 = vpop.f32.mrb[0].mxu0
        %1047 = vdwg.mxu0
        %v1048 = vadd.f32 %v847, %v899
        %v1049 = vadd.f32 %v848, %v947
        %v1050 = vadd.f32 %v849, %v995
        %v1051 = vadd.f32 %v850, %v1043
        %1052 = vst.msk [vmem:[#allocation5] sm:$0xff] %vm545, %v1048
        %1053 = vst.msk [vmem:[#allocation5 + $0x8] sm:$0xff] %vm545, %v1049
        %1054 = vst.msk [vmem:[#allocation5 + $0x10] sm:$0xff] %vm545, %v1050
        %1055 = vst.msk [vmem:[#allocation5 + $0x18] sm:$0xff] %vm545, %v1051
        %1056 = vst.msk [vmem:[#allocation3] sm:$0xff] %vm818, %v746
        %1057 = vst.msk [vmem:[#allocation3 + $0x8] sm:$0xff] %vm818, %v747
        %1058 = vst.msk [vmem:[#allocation3 + $0x10] sm:$0xff] %vm818, %v748
        %1059 = vst.msk [vmem:[#allocation3 + $0x18] sm:$0xff] %vm818, %v749
        %p1060 = scmp.eq.s32.totalorder %s34, 1
        // Predicated region
        $region69: #{tpu_custom_call.1} parent=43 // pred_check
          %p1061 = pneg %p1060
        $region70: #{tpu_custom_call.1} parent=43 // pred_check_branch
          %1063 = sbr.rel (%p1061) target = $region72
        $region71: #{tpu_custom_call.1} parent=43 // pred_region
          %v1064 = vld [vmem:[#allocation5] sm:$0xff]
          %v1065 = vld [vmem:[#allocation5 + $0x8] sm:$0xff]
          %v1066 = vld [vmem:[#allocation5 + $0x10] sm:$0xff]
          %v1067 = vld [vmem:[#allocation5 + $0x18] sm:$0xff]
          %v1068 = vld [vmem:[#allocation4] sm:$0xff]
          %v1069 = vld [vmem:[#allocation4 + $0x8] sm:$0xff]
          %v1070 = vld [vmem:[#allocation4 + $0x10] sm:$0xff]
          %v1071 = vld [vmem:[#allocation4 + $0x18] sm:$0xff]
          %v1072 = vrcp.pop %v1068
          %v1073 = vrcp.pop %v1069
          %v1074 = vrcp.pop %v1070
          %v1075 = vrcp.pop %v1071
          %1077 = vset.pattern.permute.xlu0 0
          %1078 = vperm.xlu0 %1077, %v1072
          %v1079 = vpop.permute.xlu0 %1078
          %1082 = vset.pattern.permute.xlu0 0
          %1083 = vperm.xlu0 %1082, %v1073
          %v1084 = vpop.permute.xlu0 %1083
          %1087 = vset.pattern.permute.xlu0 0
          %1088 = vperm.xlu0 %1087, %v1074
          %v1089 = vpop.permute.xlu0 %1088
          %1092 = vset.pattern.permute.xlu0 0
          %1093 = vperm.xlu0 %1092, %v1075
          %v1094 = vpop.permute.xlu0 %1093
          %v1096 = vmul.f32 %v1064, %v1079
          %v1097 = vmul.f32 %v1065, %v1084
          %v1098 = vmul.f32 %v1066, %v1089
          %v1099 = vmul.f32 %v1067, %v1094
          %1101 = vrot.lane.b32.xlu0 %v1097, 8
          %v1102 = vpop.permute.xlu0 %1101
          %1105 = vrot.lane.b32.xlu0 %v1098, 16
          %v1106 = vpop.permute.xlu0 %1105
          %1109 = vrot.lane.b32.xlu0 %v1099, 24
          %v1110 = vpop.permute.xlu0 %1109
          %v1112 = vsel %vm545, %v1096, %v1102
          %vm1113 = vcmask 130048
          %v1114 = vsel %vm1113, %v1112, %v1106
          %vm1115 = vcmask 195584
          %v1116 = vsel %vm1115, %v1114, %v1110
          %v1117 = vpack.c.bf16 %v1116, %v1116
          %v1118 = vld [vmem:[#allocation14] sm:$0xf]
          %v1119 = vld [vmem:[#allocation14 + $0x4] sm:$0xf]
          %v1120 = vld [vmem:[#allocation14 + $0x8] sm:$0xf]
          %v1121 = vld [vmem:[#allocation14 + $0xc] sm:$0xf]
          %v1122 = vld [vmem:[%s5] sm:$0x1]
          %v1124 = vlaneseq
          %v1125 = vshrl.u32 %v1124, 7
          %v1126 = vsub.s32 0, %v1125
          %v1127 = vrot.slane %v1122, %v1126
          %v1133 = vunpack.c.l.b16 %v1118
          %v1134 = vunpack.c.l.b16 %v1119
          %v1135 = vunpack.c.l.b16 %v1120
          %v1136 = vunpack.c.l.b16 %v1121
          %v1137 = vpack.c.b16 %v1134, %v1133
          %v1138 = vpack.c.b16 %v1136, %v1135
          %v1142 = vsel %vm489, %v1117, 0
          %1144 = vmatprep.subr.bf16.mxu0 0
          %1145 = vmatpush1.bf16.msra.mxu0 %v1137
          %1146 = vmatprep.subr.bf16.mxu0 0
          %1147 = vmatpush1.bf16.msra.mxu0 %v1138
          %1148 = vmatprep.subr.bf16.mxu0 0
          %1149 = vmatpush1.bf16.msra.mxu0 0
          %1150 = vmatprep.subr.bf16.mxu0 0
          %1151 = vmatpush1.bf16.msra.mxu0 0
          %1152 = vmatprep.subr.bf16.mxu0 0
          %1153 = vmatpush1.bf16.msra.mxu0 0
          %1154 = vmatprep.subr.bf16.mxu0 0
          %1155 = vmatpush1.bf16.msra.mxu0 0
          %1156 = vmatprep.subr.bf16.mxu0 0
          %1157 = vmatpush1.bf16.msra.mxu0 0
          %1158 = vmatprep.subr.bf16.mxu0 0
          %1159 = vmatpush1.bf16.msra.mxu0 0
          %1160 = vmatprep.subr.bf16.mxu0 0
          %1161 = vmatpush1.bf16.msra.mxu0 0
          %1162 = vmatprep.subr.bf16.mxu0 0
          %1163 = vmatpush1.bf16.msra.mxu0 0
          %1164 = vmatprep.subr.bf16.mxu0 0
          %1165 = vmatpush1.bf16.msra.mxu0 0
          %1166 = vmatprep.subr.bf16.mxu0 0
          %1167 = vmatpush1.bf16.msra.mxu0 0
          %1168 = vmatprep.subr.bf16.mxu0 0
          %1169 = vmatpush1.bf16.msra.mxu0 0
          %1170 = vmatprep.subr.bf16.mxu0 0
          %1171 = vmatpush1.bf16.msra.mxu0 0
          %1172 = vmatprep.subr.bf16.mxu0 0
          %1173 = vmatpush1.bf16.msra.mxu0 0
          %1174 = vmatprep.subr.bf16.mxu0 0
          %1175 = vmatpush1.bf16.msra.mxu0 0
          %1176 = vmatprep.mubr.bf16.mxu0 0
          %1177 = vmatmul.mubr.bf16.gmra.mrb[0].mxu0 %v1142
          %v1178 = vpop.f32.mrb[0].mxu0
          %v1179 = vadd.f32 %v1127, %v1178
          %v1180 = vpop.f32.mrb[0].mxu0
          %v1181 = vpop.f32.mrb[0].mxu0
          %v1182 = vpop.f32.mrb[0].mxu0
          %1183 = vdwg.mxu0
          %1184 = vst.msk [vmem:[%s375] sm:$0xff] %vm489, %v1179
        $region72: #{tpu_custom_call.1} parent=43 // pred_fallthru
          _
        %s1185 = sand.u32 %s196, 1
        %s1186 = scalar_lea.sflag [#allocation8], %s1185
        %s1187 = sand.u32 %s196, 1
        %s1188 = smul.addr %s1187, 8
        %s1189 = scalar_lea.vmem [#allocation15], %s1188
        // Predicated region
        $region73: #{tpu_custom_call.1} parent=43 // pred_check
          %p1190 = pneg %p206
        $region74: #{tpu_custom_call.1} parent=43 // pred_check_branch
          %1192 = sbr.rel (%p1190) target = $region76
        $region75: #{tpu_custom_call.1} parent=43 // pred_region
          %s1194 = ssub.s32 128, 128
          %1195 = vsyncadd %s1186, %s1194
          %s1196 = smul.addr %s32, 2
          %s1197 = sadd.s32 %s33, %s1196
          %s1198 = smul.addr %s1197, 128
          %s1199 = scalar_lea.hbm %s6, %s1198
          %s1201 = sshll.u32 %s1189, 4
          %s1202 = int_to_ptr.vmem [resolvable:$true] %s1201
          %1204 = dma.vmem_to_hbm [thread:$0]  %s1202, 128, %s1199, %s1186
        $region76: #{tpu_custom_call.1} parent=43 // pred_fallthru
          _
      $region44: #{tpu_custom_call.1} parent=5 // pred_fallthru
        _
      %p1205 = scmp.le.s32.totalorder 2, %s22
      // Predicated region
      $region77: #{tpu_custom_call.1} parent=5 // pred_check
        %p1206 = pneg %p1205
      $region78: #{tpu_custom_call.1} parent=5 // pred_check_branch
        %1208 = sbr.rel (%p1206) target = $region80
      $region79: #{tpu_custom_call.1} parent=5 // pred_region
        %s1209 = ssub.s32 %s22, 2
        // Predicated region
        $region81: #{tpu_custom_call.1} parent=79 // pred_check
          %p1210 = pneg %p212
        $region82: #{tpu_custom_call.1} parent=79 // pred_check_branch
          %1212 = sbr.rel (%p1210) target = $region84
        $region83: #{tpu_custom_call.1} parent=79 // pred_region
          %s1213 = sand.u32 %s197, 1
          %s1214 = scalar_lea.sflag [#allocation8], %s1213
          %s1215 = sand.u32 %s197, 1
          %s1216 = smul.addr %s1215, 8
          %s1217 = scalar_lea.vmem [#allocation15], %s1216
          %1218 = dma.done %s1214, 128
        $region84: #{tpu_custom_call.1} parent=79 // pred_fallthru
          _
      $region80: #{tpu_custom_call.1} parent=5 // pred_fallthru
        _
    $region6: #{tpu_custom_call.1} parent=1 // loop_footer
      %s26 = sadd.s32 1, %s22
    $region7: #{tpu_custom_call.1} parent=1 // loop_footer_branch
      %21 = sbr.rel target = $region3
    $region8: #{tpu_custom_call.1} parent=1 // loop_exit
      _
    %1219 = vsyncpa [#allocation7], 1
    %s1220 = scalar_lea.sflag [#allocation7], 1
    %1221 = vsyncpa %s1220, 1
    %1222 = vsyncpa [#allocation10], 1
    %s1223 = scalar_lea.sflag [#allocation10], 1
    %1224 = vsyncpa %s1223, 1
    %1225 = vsyncpa [#allocation13], 1
    %1226 = vsyncpa [#allocation8], 1
    %s1227 = scalar_lea.sflag [#allocation8], 1
    %1228 = vsyncpa %s1227, 1

</llo_original>
